<compile_context>
chip_gen: v7x
topology: tpu7x:2x2x1
jax: 0.10.0
libtpu: 0.0.40
codegen_flags: <defaults>
</compile_context>

<pallas_src>
import functools
import math

import jax
import jax.numpy as jnp
from jax.experimental import pallas as pl
from jax.experimental.pallas import tpu as pltpu

EPS = 1e-5  # PyTorch GroupNorm default


# ----------------------------------------------------------------------------
# Fused Pallas kernel: GroupNorm + qkv + softmax attention + proj + residual
# ----------------------------------------------------------------------------
def _self_attention_kernel(x_ref, gamma_ref, beta_ref, gavg_ref, wqkv_ref,
                           bqkv_ref, wproj_ref, bproj_ref, o_ref,
                           *, n_ch, batch_tile, eps, mm_dtype, f32_path,
                           bf16_exp):
    C = n_ch

    # Hoist weight loads / casts out of the per-image loop (shared across Bt).
    gamma = gamma_ref[...].astype(jnp.float32)          # (C, 1)
    beta = beta_ref[...].astype(jnp.float32)            # (C, 1)
    gavg = gavg_ref[...]                                 # (C, C), holds 1/(cg*S)
    wqkv = wqkv_ref[...].astype(mm_dtype)                # (3C, C), scale folded in
    bqkv = bqkv_ref[...].astype(jnp.float32)             # (3C, 1), scale folded in
    wproj = wproj_ref[...].astype(mm_dtype)              # (C, C)
    bproj = bproj_ref[...].astype(jnp.float32)           # (C, 1)

    for b in range(batch_tile):                          # static unroll, small Bt
        x = x_ref[b].astype(jnp.float32)                 # (C, S) channel-major

        # ---------------- GroupNorm (two-pass, f32) ----------------
        # Lane-reduce first, then tiny group-averaging matvec (1/(cg*S) folded).
        sum_c = jnp.sum(x, axis=1, keepdims=True)                       # (C, 1)
        mean_c = jnp.dot(gavg, sum_c, preferred_element_type=jnp.float32)
        xc = x - mean_c
        sq_c = jnp.sum(xc * xc, axis=1, keepdims=True)                  # (C, 1)
        var_c = jnp.dot(gavg, sq_c, preferred_element_type=jnp.float32)
        inv_std = jax.lax.rsqrt(var_c + eps)
        xn = xc * (inv_std * gamma) + beta                              # (C, S)

        # ---------------- qkv 1x1 conv: one (3C, C) @ (C, S) matmul --------
        qkv = jnp.dot(wqkv, xn.astype(mm_dtype),
                      preferred_element_type=jnp.float32) + bqkv        # (3C, S)
        q = qkv[0 * C:1 * C, :].astype(mm_dtype)   # already scaled by 1/sqrt(C)
        k = qkv[1 * C:2 * C, :].astype(mm_dtype)
        v = qkv[2 * C:3 * C, :].astype(mm_dtype)

        # ---------------- attention (keys on sublanes, queries on lanes) ---
        # st[j, i] = k_j . q_i  -- contraction on axis 0, no explicit transpose.
        st = jax.lax.dot_general(k, q, (((0,), (0,)), ((), ())),
                                 preferred_element_type=jnp.float32)    # (S, S)
        m = jnp.max(st, axis=0, keepdims=True)                          # (1, S)
        e = st - m
        if bf16_exp and not f32_path:
            p = jnp.exp(e.astype(mm_dtype))        # bf16 EUP (v6e/v7x option)
        else:
            p = jnp.exp(e)                          # f32 EUP
        l = jnp.sum(p, axis=0, keepdims=True, dtype=jnp.float32)        # (1, S)

        # Deferred softmax normalization: PV first, divide the small result.
        o = jnp.dot(v, p.astype(mm_dtype),
                    preferred_element_type=jnp.float32)                 # (C, S)
        if f32_path:
            inv_l = 1.0 / l                         # exact (matches torch f32)
        else:
            inv_l = pl.reciprocal(l, approx=True)   # EUP recip, free slot
        o = o * inv_l                                # (C, S) multiply, not (S, S)

        # ---------------- proj 1x1 conv + residual ----------------
        out = jnp.dot(wproj, o.astype(mm_dtype),
                      preferred_element_type=jnp.float32) + bproj       # (C, S)
        o_ref[b] = (x + out).astype(o_ref.dtype)     # lane-dense (C, S) store


# ----------------------------------------------------------------------------
# Wrapper (PyTorch-style NCHW in / out; only free reshapes outside the kernel)
# ----------------------------------------------------------------------------
def _pick_batch_tile(batch):
    # Amortize per-step overhead, but keep >= 2 grid steps when possible so
    # both v7x TensorCores get work (free/no-op on 1-TC v5e/v6e).
    if batch <= 1:
        return 1
    for bt in (8, 4, 2):
        if batch % bt == 0 and batch // bt >= 2:
            return bt
    return 1


def self_attention_forward(x_nchw, params, compute_dtype=jnp.bfloat16,
                           bf16_exp=False, batch_tile=None):
    B, C, H, W = x_nchw.shape
    S = H * W
    G = min(16, C)
    assert C % G == 0, f"GroupNorm requires C % num_groups == 0 (C={C}, G={G})"
    cg = C // G

    mm_dtype = jnp.dtype(compute_dtype)
    f32_path = (mm_dtype == jnp.dtype(jnp.float32))

    if batch_tile is None:
        batch_tile = _pick_batch_tile(B)
    assert B % batch_tile == 0, (B, batch_tile)
    n_steps = B // batch_tile

    x2 = x_nchw.reshape(B, C, S)                       # free reshape, no transpose

    # Hoisted group-averaging projector; 1/(cg*S) folded into its entries.
    cidx = jnp.arange(C, dtype=jnp.int32)
    gavg = (cidx[:, None] // cg == cidx[None, :] // cg).astype(jnp.float32)
    gavg = gavg / float(cg * S)

    gamma = params["norm_w"].reshape(C, 1).astype(jnp.float32)
    beta = params["norm_b"].reshape(C, 1).astype(jnp.float32)

    # Fold the 1/sqrt(C) attention scale into the q-rows of W_qkv / b_qkv.
    scale = 1.0 / math.sqrt(C)
    row_scale = jnp.concatenate(
        [jnp.full((C, 1), scale, jnp.float32), jnp.ones((2 * C, 1), jnp.float32)],
        axis=0)
    wqkv = params["qkv_w"].reshape(3 * C, C).astype(jnp.float32) * row_scale
    bqkv = params["qkv_b"].reshape(3 * C, 1).astype(jnp.float32) * row_scale
    wproj = params["proj_w"].reshape(C, C).astype(jnp.float32)
    bproj = params["proj_b"].reshape(C, 1).astype(jnp.float32)

    kern = functools.partial(_self_attention_kernel, n_ch=C,
                             batch_tile=batch_tile, eps=EPS, mm_dtype=mm_dtype,
                             f32_path=f32_path, bf16_exp=bf16_exp)

    flops = 2 * B * S * (4 * C * C + 2 * C * S)          # qkv + scores + PV + proj
    transcendentals = B * S * S                           # exp
    bytes_accessed = 4 * (2 * B * C * S + 4 * C * C + 4 * C + 2 * C + C * C)

    out = pl.pallas_call(
        kern,
        out_shape=jax.ShapeDtypeStruct((B, C, S), x_nchw.dtype),
        grid=(n_steps,),
        in_specs=[
            pl.BlockSpec((batch_tile, C, S), lambda b: (b, 0, 0)),   # x
            pl.BlockSpec((C, 1), lambda b: (0, 0)),                  # gamma
            pl.BlockSpec((C, 1), lambda b: (0, 0)),                  # beta
            pl.BlockSpec((C, C), lambda b: (0, 0)),                  # group-avg mat
            pl.BlockSpec((3 * C, C), lambda b: (0, 0)),              # W_qkv (scaled)
            pl.BlockSpec((3 * C, 1), lambda b: (0, 0)),              # b_qkv (scaled)
            pl.BlockSpec((C, C), lambda b: (0, 0)),                  # W_proj
            pl.BlockSpec((C, 1), lambda b: (0, 0)),                  # b_proj
        ],
        out_specs=pl.BlockSpec((batch_tile, C, S), lambda b: (b, 0, 0)),
        compiler_params=pltpu.CompilerParams(
            dimension_semantics=("parallel",),
            vmem_limit_bytes=64 * 1024 * 1024),
        cost_estimate=pl.CostEstimate(flops=flops,
                                      transcendentals=transcendentals,
                                      bytes_accessed=bytes_accessed),
    )(x2, gamma, beta, gavg, wqkv, bqkv, wproj, bproj)
    return out.reshape(B, C, H, W)


# ----------------------------------------------------------------------------
# Pure-JAX reference (for an in-script correctness check)
# ----------------------------------------------------------------------------
def self_attention_reference(x, params):
    B, C, H, W = x.shape
    S = H * W
    G = min(16, C)
    hi = jax.lax.Precision.HIGHEST
    xf = x.reshape(B, C, S).astype(jnp.float32)
    xg = xf.reshape(B, G, (C // G) * S)
    mean = jnp.mean(xg, axis=2, keepdims=True)
    var = jnp.mean((xg - mean) ** 2, axis=2, keepdims=True)
    xn = ((xg - mean) / jnp.sqrt(var + EPS)).reshape(B, C, S)
    xn = xn * params["norm_w"].reshape(1, C, 1) + params["norm_b"].reshape(1, C, 1)
    wqkv = params["qkv_w"].reshape(3 * C, C)
    qkv = jnp.einsum("oc,bcs->bos", wqkv, xn, precision=hi) \
        + params["qkv_b"].reshape(1, 3 * C, 1)
    q, k, v = qkv[:, :C], qkv[:, C:2 * C], qkv[:, 2 * C:]
    scores = jnp.einsum("bci,bcj->bij", q, k, precision=hi) / math.sqrt(C)
    attn = jax.nn.softmax(scores, axis=-1)
    o = jnp.einsum("bij,bcj->bci", attn, v, precision=hi)
    wproj = params["proj_w"].reshape(C, C)
    proj = jnp.einsum("oc,bcs->bos", wproj, o, precision=hi) \
        + params["proj_b"].reshape(1, C, 1)
    return x + proj.reshape(B, C, H, W)


# ----------------------------------------------------------------------------
# Deterministic parameter initialization (shapes follow the torch module)
# ----------------------------------------------------------------------------
def init_params(key, ch):
    keys = jax.random.split(key, 6)

    def nrm(k, shape, scale=0.05):
        return scale * jax.random.normal(k, shape, jnp.float32)

    return {
        "norm_w": 1.0 + nrm(keys[0], (ch,), 0.02),     # GroupNorm weight
        "norm_b": nrm(keys[1], (ch,), 0.02),           # GroupNorm bias
        "qkv_w": nrm(keys[2], (3 * ch, ch, 1)),        # torch Conv1d weight layout
        "qkv_b": nrm(keys[3], (3 * ch,)),
        "proj_w": nrm(keys[4], (ch, ch, 1)),
        "proj_b": nrm(keys[5], (ch,)),
    }


if __name__ == "__main__":
    # GroupNorm(min(16, C) = 16, C); S = H*W = 256 tokens (lane-dense last dim).
    B, C, H, W = 2, 32, 16, 16
    key = jax.random.PRNGKey(0)
    kx, kp = jax.random.split(key)
    x = jax.random.normal(kx, (B, C, H, W), jnp.float32)   # NCHW like torch
    params = init_params(kp, C)

    y_ref = self_attention_reference(x, params)

    # Exact-precision path (f32 MXU operands, exact reciprocal) -> torch numerics.
    fwd_f32 = jax.jit(lambda a, p: self_attention_forward(a, p,
                                                          compute_dtype=jnp.float32))
    y32 = fwd_f32(x, params)
    jax.block_until_ready(y32)
    assert y32.shape == (B, C, H, W) and y32.dtype == jnp.float32
    err32 = float(jnp.max(jnp.abs(y32 - y_ref)))
    assert err32 < 2e-3, f"f32 path: max abs err vs reference: {err32}"

    # Default fast path (bf16 MXU operands, f32 accumulation / stats / softmax).
    fwd_bf16 = jax.jit(lambda a, p: self_attention_forward(a, p,
                                                           compute_dtype=jnp.bfloat16))
    ybf = fwd_bf16(x, params)
    jax.block_until_ready(ybf)
    assert ybf.shape == (B, C, H, W) and ybf.dtype == jnp.float32
    errbf = float(jnp.max(jnp.abs(ybf - y_ref)))
    assert errbf < 2e-2, f"bf16 path: max abs err vs reference: {errbf}"

    print("KERNEL_OK")
</pallas_src>

<mosaic_0001>
module attributes {stable_mosaic.version = 11 : i64} {
  func.func @_self_attention_kernel(%arg0: i32, %arg1: memref<1x32x256xf32, #tpu.memory_space<vmem>>, %arg2: memref<32x1xf32, #tpu.memory_space<vmem>>, %arg3: memref<32x1xf32, #tpu.memory_space<vmem>>, %arg4: memref<32x32xf32, #tpu.memory_space<vmem>>, %arg5: memref<96x32xf32, #tpu.memory_space<vmem>>, %arg6: memref<96x1xf32, #tpu.memory_space<vmem>>, %arg7: memref<32x32xf32, #tpu.memory_space<vmem>>, %arg8: memref<32x1xf32, #tpu.memory_space<vmem>>, %arg9: memref<1x32x256xf32, #tpu.memory_space<vmem>>) attributes {dimension_semantics = [#tpu.dimension_semantics<parallel>], iteration_bounds = array<i64: 2>, scalar_prefetch = 0 : i64, scratch_operands = 0 : i64, tpu.core_type = #tpu.core_type<tc>, window_params = [{transform_indices = @transform_0, window_bounds = array<i64: 1, 32, 256>}, {pipeline_mode = #tpu.pipeline_mode<synchronous>, transform_indices = @transform_1, window_bounds = array<i64: 32, 1>}, {pipeline_mode = #tpu.pipeline_mode<synchronous>, transform_indices = @transform_2, window_bounds = array<i64: 32, 1>}, {pipeline_mode = #tpu.pipeline_mode<synchronous>, transform_indices = @transform_3, window_bounds = array<i64: 32, 32>}, {pipeline_mode = #tpu.pipeline_mode<synchronous>, transform_indices = @transform_4, window_bounds = array<i64: 96, 32>}, {pipeline_mode = #tpu.pipeline_mode<synchronous>, transform_indices = @transform_5, window_bounds = array<i64: 96, 1>}, {pipeline_mode = #tpu.pipeline_mode<synchronous>, transform_indices = @transform_6, window_bounds = array<i64: 32, 32>}, {pipeline_mode = #tpu.pipeline_mode<synchronous>, transform_indices = @transform_7, window_bounds = array<i64: 32, 1>}, {transform_indices = @transform_8, window_bounds = array<i64: 1, 32, 256>}]} {
    %c0 = arith.constant 0 : index
    %c0_0 = arith.constant 0 : index
    %0 = vector.load %arg2[%c0, %c0_0] : memref<32x1xf32, #tpu.memory_space<vmem>>, vector<32x1xf32>
    %c0_1 = arith.constant 0 : index
    %c0_2 = arith.constant 0 : index
    %1 = vector.load %arg3[%c0_1, %c0_2] : memref<32x1xf32, #tpu.memory_space<vmem>>, vector<32x1xf32>
    %c0_3 = arith.constant 0 : index
    %c0_4 = arith.constant 0 : index
    %2 = vector.load %arg4[%c0_3, %c0_4] : memref<32x32xf32, #tpu.memory_space<vmem>>, vector<32x32xf32>
    %c0_5 = arith.constant 0 : index
    %c0_6 = arith.constant 0 : index
    %3 = vector.load %arg5[%c0_5, %c0_6] : memref<96x32xf32, #tpu.memory_space<vmem>>, vector<96x32xf32>
    %c0_7 = arith.constant 0 : index
    %c0_8 = arith.constant 0 : index
    %4 = vector.load %arg6[%c0_7, %c0_8] : memref<96x1xf32, #tpu.memory_space<vmem>>, vector<96x1xf32>
    %c0_9 = arith.constant 0 : index
    %c0_10 = arith.constant 0 : index
    %5 = vector.load %arg7[%c0_9, %c0_10] : memref<32x32xf32, #tpu.memory_space<vmem>>, vector<32x32xf32>
    %c0_11 = arith.constant 0 : index
    %c0_12 = arith.constant 0 : index
    %6 = vector.load %arg8[%c0_11, %c0_12] : memref<32x1xf32, #tpu.memory_space<vmem>>, vector<32x1xf32>
    %c0_13 = arith.constant 0 : index
    %c0_14 = arith.constant 0 : index
    %c0_15 = arith.constant 0 : index
    %7 = vector.load %arg1[%c0_13, %c0_14, %c0_15] : memref<1x32x256xf32, #tpu.memory_space<vmem>>, vector<1x32x256xf32>
    %8 = vector.shape_cast %7 : vector<1x32x256xf32> to vector<32x256xf32>
    %cst = arith.constant dense<0.000000e+00> : vector<32xf32>
    %9 = vector.multi_reduction <add>, %8, %cst [1] : vector<32x256xf32> to vector<32xf32>
    %10 = vector.shape_cast %9 : vector<32xf32> to vector<32x1xf32>
    %cst_16 = arith.constant dense<0.000000e+00> : vector<32x1xf32>
    %11 = tpu.matmul %2, %10, %cst_16 {dimension_numbers = #tpu.dot_dimension_numbers<[1], [0], [0], [1], [0, 0, 1, 1], [], []>} : vector<32x32xf32>, vector<32x1xf32>, vector<32x1xf32> -> vector<32x1xf32>
    %12 = vector.broadcast %11 : vector<32x1xf32> to vector<32x256xf32>
    %13 = arith.subf %8, %12 : vector<32x256xf32>
    %14 = arith.mulf %13, %13 : vector<32x256xf32>
    %cst_17 = arith.constant dense<0.000000e+00> : vector<32xf32>
    %15 = vector.multi_reduction <add>, %14, %cst_17 [1] : vector<32x256xf32> to vector<32xf32>
    %16 = vector.shape_cast %15 : vector<32xf32> to vector<32x1xf32>
    %cst_18 = arith.constant dense<0.000000e+00> : vector<32x1xf32>
    %17 = tpu.matmul %2, %16, %cst_18 {dimension_numbers = #tpu.dot_dimension_numbers<[1], [0], [0], [1], [0, 0, 1, 1], [], []>} : vector<32x32xf32>, vector<32x1xf32>, vector<32x1xf32> -> vector<32x1xf32>
    %cst_19 = arith.constant 9.99999974E-6 : f32
    %18 = vector.broadcast %cst_19 : f32 to vector<32x1xf32>
    %19 = arith.addf %17, %18 : vector<32x1xf32>
    %20 = math.rsqrt %19 : vector<32x1xf32>
    %21 = arith.mulf %20, %0 : vector<32x1xf32>
    %22 = vector.broadcast %21 : vector<32x1xf32> to vector<32x256xf32>
    %23 = arith.mulf %13, %22 : vector<32x256xf32>
    %24 = vector.broadcast %1 : vector<32x1xf32> to vector<32x256xf32>
    %25 = arith.addf %23, %24 : vector<32x256xf32>
    %cst_20 = arith.constant dense<0.000000e+00> : vector<96x256xf32>
    %26 = tpu.matmul %3, %25, %cst_20 {dimension_numbers = #tpu.dot_dimension_numbers<[1], [0], [0], [1], [0, 0, 1, 1], [], []>} : vector<96x32xf32>, vector<32x256xf32>, vector<96x256xf32> -> vector<96x256xf32>
    %27 = vector.broadcast %4 : vector<96x1xf32> to vector<96x256xf32>
    %28 = arith.addf %26, %27 : vector<96x256xf32>
    %29 = vector.extract_strided_slice %28 {offsets = [0, 0], sizes = [32, 256], strides = [1, 1]} : vector<96x256xf32> to vector<32x256xf32>
    %30 = vector.extract_strided_slice %28 {offsets = [32, 0], sizes = [32, 256], strides = [1, 1]} : vector<96x256xf32> to vector<32x256xf32>
    %31 = vector.extract_strided_slice %28 {offsets = [64, 0], sizes = [32, 256], strides = [1, 1]} : vector<96x256xf32> to vector<32x256xf32>
    %cst_21 = arith.constant dense<0.000000e+00> : vector<256x256xf32>
    %32 = tpu.matmul %30, %29, %cst_21 {dimension_numbers = #tpu.dot_dimension_numbers<[0], [0], [1], [1], [0, 1, 1, 1], [], []>} : vector<32x256xf32>, vector<32x256xf32>, vector<256x256xf32> -> vector<256x256xf32>
    %cst_22 = arith.constant dense<0xFF800000> : vector<256xf32>
    %33 = vector.multi_reduction <maximumf>, %32, %cst_22 [0] : vector<256x256xf32> to vector<256xf32>
    %34 = vector.shape_cast %33 : vector<256xf32> to vector<1x256xf32>
    %35 = vector.broadcast %34 : vector<1x256xf32> to vector<256x256xf32>
    %36 = arith.subf %32, %35 : vector<256x256xf32>
    %37 = math.exp %36 : vector<256x256xf32>
    %cst_23 = arith.constant dense<0.000000e+00> : vector<256xf32>
    %38 = vector.multi_reduction <add>, %37, %cst_23 [0] : vector<256x256xf32> to vector<256xf32>
    %39 = vector.shape_cast %38 : vector<256xf32> to vector<1x256xf32>
    %cst_24 = arith.constant dense<0.000000e+00> : vector<32x256xf32>
    %40 = tpu.matmul %31, %37, %cst_24 {dimension_numbers = #tpu.dot_dimension_numbers<[1], [0], [0], [1], [0, 0, 1, 1], [], []>} : vector<32x256xf32>, vector<256x256xf32>, vector<32x256xf32> -> vector<32x256xf32>
    %cst_25 = arith.constant 1.000000e+00 : f32
    %41 = vector.broadcast %cst_25 : f32 to vector<1x256xf32>
    %42 = arith.divf %41, %39 : vector<1x256xf32>
    %43 = vector.broadcast %42 : vector<1x256xf32> to vector<32x256xf32>
    %44 = arith.mulf %40, %43 : vector<32x256xf32>
    %cst_26 = arith.constant dense<0.000000e+00> : vector<32x256xf32>
    %45 = tpu.matmul %5, %44, %cst_26 {dimension_numbers = #tpu.dot_dimension_numbers<[1], [0], [0], [1], [0, 0, 1, 1], [], []>} : vector<32x32xf32>, vector<32x256xf32>, vector<32x256xf32> -> vector<32x256xf32>
    %46 = vector.broadcast %6 : vector<32x1xf32> to vector<32x256xf32>
    %47 = arith.addf %45, %46 : vector<32x256xf32>
    %48 = arith.addf %8, %47 : vector<32x256xf32>
    %c0_27 = arith.constant 0 : index
    %c0_28 = arith.constant 0 : index
    %c0_29 = arith.constant 0 : index
    %49 = vector.load %arg9[%c0_27, %c0_28, %c0_29] : memref<1x32x256xf32, #tpu.memory_space<vmem>>, vector<1x32x256xf32>
    %50 = vector.shape_cast %49 : vector<1x32x256xf32> to vector<32x256xf32>
    %51 = vector.shape_cast %48 : vector<32x256xf32> to vector<1x32x256xf32>
    tpu.vector_store %arg9[%c0_27, %c0_28, %c0_29], %51 {strides = array<i32>} : memref<1x32x256xf32, #tpu.memory_space<vmem>>, vector<1x32x256xf32>,
    return
  }
  func.func @transform_0(%arg0: i32) -> (i32, i32, i32) {
    %c0_i32 = arith.constant 0 : i32
    %c0_i32_0 = arith.constant 0 : i32
    %c0_i32_1 = arith.constant 0 : i32
    return %arg0, %c0_i32, %c0_i32_0 : i32, i32, i32
  }
  func.func @transform_1(%arg0: i32) -> (i32, i32) {
    %c0_i32 = arith.constant 0 : i32
    %c0_i32_0 = arith.constant 0 : i32
    %c0_i32_1 = arith.constant 0 : i32
    return %c0_i32, %c0_i32_0 : i32, i32
  }
  func.func @transform_2(%arg0: i32) -> (i32, i32) {
    %c0_i32 = arith.constant 0 : i32
    %c0_i32_0 = arith.constant 0 : i32
    %c0_i32_1 = arith.constant 0 : i32
    return %c0_i32, %c0_i32_0 : i32, i32
  }
  func.func @transform_3(%arg0: i32) -> (i32, i32) {
    %c0_i32 = arith.constant 0 : i32
    %c0_i32_0 = arith.constant 0 : i32
    %c0_i32_1 = arith.constant 0 : i32
    return %c0_i32, %c0_i32_0 : i32, i32
  }
  func.func @transform_4(%arg0: i32) -> (i32, i32) {
    %c0_i32 = arith.constant 0 : i32
    %c0_i32_0 = arith.constant 0 : i32
    %c0_i32_1 = arith.constant 0 : i32
    return %c0_i32, %c0_i32_0 : i32, i32
  }
  func.func @transform_5(%arg0: i32) -> (i32, i32) {
    %c0_i32 = arith.constant 0 : i32
    %c0_i32_0 = arith.constant 0 : i32
    %c0_i32_1 = arith.constant 0 : i32
    return %c0_i32, %c0_i32_0 : i32, i32
  }
  func.func @transform_6(%arg0: i32) -> (i32, i32) {
    %c0_i32 = arith.constant 0 : i32
    %c0_i32_0 = arith.constant 0 : i32
    %c0_i32_1 = arith.constant 0 : i32
    return %c0_i32, %c0_i32_0 : i32, i32
  }
  func.func @transform_7(%arg0: i32) -> (i32, i32) {
    %c0_i32 = arith.constant 0 : i32
    %c0_i32_0 = arith.constant 0 : i32
    %c0_i32_1 = arith.constant 0 : i32
    return %c0_i32, %c0_i32_0 : i32, i32
  }
  func.func @transform_8(%arg0: i32) -> (i32, i32, i32) {
    %c0_i32 = arith.constant 0 : i32
    %c0_i32_0 = arith.constant 0 : i32
    %c0_i32_1 = arith.constant 0 : i32
    return %arg0, %c0_i32, %c0_i32_0 : i32, i32, i32
  }
}

</mosaic_0001>

<llo_original>
// kernel: _lambda_.1
$region0: #{_lambda_.1}
  #allocation0 [shape = 'u32[]', space=smem, size = 0x4, offset = 0x4, fixed_abs, tag = 'smem constant byte address 0x4 - core index']
  #allocation1 [shape = 'u32[144,128]{1,0:T(1,128)}', space=vmem, size = 0x12000, scoped, tag = 'internal scratch']
  %s0 = inlined_call_operand.hbm [shape: f32[2,32,256], index: 0, kind: input, shape index: {}]
  %s1 = inlined_call_operand.hbm [shape: f32[32,1], index: 1, kind: input, shape index: {}]
  %s2 = inlined_call_operand.hbm [shape: f32[32,1], index: 2, kind: input, shape index: {}]
  %s3 = inlined_call_operand.hbm [shape: f32[32,32], index: 3, kind: input, shape index: {}]
  %s4 = inlined_call_operand.hbm [shape: f32[96,32], index: 4, kind: input, shape index: {}]
  %s5 = inlined_call_operand.hbm [shape: f32[96,1], index: 5, kind: input, shape index: {}]
  %s6 = inlined_call_operand.hbm [shape: f32[32,32], index: 6, kind: input, shape index: {}]
  %s7 = inlined_call_operand.hbm [shape: f32[32,1], index: 7, kind: input, shape index: {}]
  %s8 = inlined_call_operand.hbm [shape: f32[2,32,256], index: 8, kind: output, shape index: {}]
  %s9 = sld [smem:[#allocation0]]
  $region97: #{_lambda_.1} parent=0
    _
  %s11 = ssub.s32 1, %s9
  %s12 = scalar_select 0, %s11, %s9
  $region1: #{_lambda_.1} parent=0
    #allocation2 [shape = 'u8[65536]{0}', space=vmem, size = 0x10000, scoped, tag = 'input window, operand 0']
    #allocation3 [shape = 's32[2]{0}', space=sflag, size = 0x8, scoped, tag = 'scoped memory for _lambda_.1']
    #allocation4 [shape = 's32[2]{0}', space=sflag, size = 0x8, scoped, tag = 'scoped memory for _lambda_.1']
    #allocation5 [shape = 'u8[16384]{0}', space=vmem, size = 0x4000, scoped, tag = 'input window, operand 1, single buffered']
    #allocation6 [shape = 's32[1]{0}', space=sflag, size = 0x4, scoped, tag = 'scoped memory for _lambda_.1']
    #allocation7 [shape = 'u8[16384]{0}', space=vmem, size = 0x4000, scoped, tag = 'input window, operand 2, single buffered']
    #allocation8 [shape = 'u8[16384]{0}', space=vmem, size = 0x4000, scoped, tag = 'input window, operand 3, single buffered']
    #allocation9 [shape = 's32[1]{0}', space=sflag, size = 0x4, scoped, tag = 'scoped memory for _lambda_.1']
    #allocation10 [shape = 'u8[49152]{0}', space=vmem, size = 0xc000, scoped, tag = 'input window, operand 4, single buffered']
    #allocation11 [shape = 'u8[49152]{0}', space=vmem, size = 0xc000, scoped, tag = 'input window, operand 5, single buffered']
    #allocation12 [shape = 's32[1]{0}', space=sflag, size = 0x4, scoped, tag = 'scoped memory for _lambda_.1']
    #allocation13 [shape = 'u8[16384]{0}', space=vmem, size = 0x4000, scoped, tag = 'input window, operand 6, single buffered']
    #allocation14 [shape = 'u8[16384]{0}', space=vmem, size = 0x4000, scoped, tag = 'input window, operand 7, single buffered']
    #allocation15 [shape = 's32[1]{0}', space=sflag, size = 0x4, scoped, tag = 'scoped memory for _lambda_.1']
    #allocation16 [shape = 'u8[65536]{0}', space=vmem, size = 0x10000, scoped, tag = 'output window, operand 0']
    %13 = vsyncpa [#allocation3], 0
    %s14 = scalar_lea.sflag [#allocation3], 1
    %15 = vsyncpa %s14, 0
    %16 = vsyncpa [#allocation6], 0
    %17 = vsyncpa [#allocation9], 0
    %18 = vsyncpa [#allocation12], 0
    %19 = vsyncpa [#allocation15], 0
    %20 = vsyncpa [#allocation4], 0
    %s21 = scalar_lea.sflag [#allocation4], 1
    %22 = vsyncpa %s21, 0
    loop: start=0, step=1, limit=4
    $region2: #{_lambda_.1} parent=1 // loop_pre_header
      _
    $region3: #{_lambda_.1} parent=1 // loop_header
      %s24 = sphi 0, %s28
      %p25 = scmp.ge.s32.totalorder %s24, 4
      %s34 = sphi 0, %s36
      %s37 = sphi 0, %s34
      %s38 = sphi 0, %s37
      %s54 = sphi 0, %s38
      %s58 = sphi 0, %s58
      %s60 = sphi 0, %s58
      %s61 = sphi 0, %s60
      %s75 = sphi 0, %s61
      %s79 = sphi 0, %s79
      %s81 = sphi 0, %s79
      %s82 = sphi 0, %s81
      %s96 = sphi 0, %s82
      %s100 = sphi 0, %s100
      %s102 = sphi 0, %s100
      %s103 = sphi 0, %s102
      %s117 = sphi 0, %s103
      %s121 = sphi 0, %s121
      %s123 = sphi 0, %s121
      %s124 = sphi 0, %s123
      %s138 = sphi 0, %s124
      %s142 = sphi 0, %s142
      %s144 = sphi 0, %s142
      %s145 = sphi 0, %s144
      %s159 = sphi 0, %s145
      %s163 = sphi 0, %s163
      %s165 = sphi 0, %s163
      %s166 = sphi 0, %s165
      %s180 = sphi 0, %s166
      %s184 = sphi 0, %s184
      %s186 = sphi 0, %s184
      %s187 = sphi 0, %s186
      %s201 = sphi 0, %s187
      %s207 = sphi 0, %s209
      %s210 = sphi 0, %s207
      %s211 = sphi 0, %s210
      %s227 = sphi 0, %s211
    $region4: #{_lambda_.1} parent=1 // loop_header_branch
      %27 = sbr.rel (%p25) target = $region8
    $region5: #{_lambda_.1} parent=1 // loop_body
      %s29 = ssub.s32 %s24, 1
      %s30 = ssub.s32 %s24, 2
      %s31 = sadd.s32 %s24, 1
      %s32 = ssub.s32 %s24, %s31
      %p33 = scmp.eq.s32.totalorder %s32, 0
      %s35 = sadd.s32 %s34, 1
      %s36 = scalar_select %p33, %s34, %s35
      %p39 = pneg %p33
      %p40 = scmp.eq.s32.totalorder %s24, 1
      %p41 = por %p39, %p40
      %p42 = scmp.ne.s32.totalorder %s34, %s37
      %p43 = scmp.eq.s32.totalorder %s24, 0
      %p44 = por %p42, %p43
      %p45 = scmp.ne.s32.totalorder %s34, %s37
      %p46 = scmp.eq.s32.totalorder %s29, 1
      %p47 = por %p45, %p46
      %p48 = scmp.ne.s32.totalorder %s37, %s38
      %p49 = scmp.eq.s32.totalorder %s29, 0
      %p50 = por %p48, %p49
      %p51 = scmp.ne.s32.totalorder %s37, %s38
      %p52 = scmp.eq.s32.totalorder %s30, 1
      %p53 = por %p51, %p52
      %p55 = scmp.ne.s32.totalorder %s38, %s54
      %p56 = scmp.eq.s32.totalorder %s30, 0
      %p57 = por %p55, %p56
      %s59 = sadd.s32 %s58, 1
      %p62 = scmp.eq.s32.totalorder %s24, 1
      %p63 = scmp.ne.s32.totalorder %s58, %s60
      %p64 = scmp.eq.s32.totalorder %s24, 0
      %p65 = por %p63, %p64
      %p66 = scmp.ne.s32.totalorder %s58, %s60
      %p67 = scmp.eq.s32.totalorder %s29, 1
      %p68 = por %p66, %p67
      %p69 = scmp.ne.s32.totalorder %s60, %s61
      %p70 = scmp.eq.s32.totalorder %s29, 0
      %p71 = por %p69, %p70
      %p72 = scmp.ne.s32.totalorder %s60, %s61
      %p73 = scmp.eq.s32.totalorder %s30, 1
      %p74 = por %p72, %p73
      %p76 = scmp.ne.s32.totalorder %s61, %s75
      %p77 = scmp.eq.s32.totalorder %s30, 0
      %p78 = por %p76, %p77
      %s80 = sadd.s32 %s79, 1
      %p83 = scmp.eq.s32.totalorder %s24, 1
      %p84 = scmp.ne.s32.totalorder %s79, %s81
      %p85 = scmp.eq.s32.totalorder %s24, 0
      %p86 = por %p84, %p85
      %p87 = scmp.ne.s32.totalorder %s79, %s81
      %p88 = scmp.eq.s32.totalorder %s29, 1
      %p89 = por %p87, %p88
      %p90 = scmp.ne.s32.totalorder %s81, %s82
      %p91 = scmp.eq.s32.totalorder %s29, 0
      %p92 = por %p90, %p91
      %p93 = scmp.ne.s32.totalorder %s81, %s82
      %p94 = scmp.eq.s32.totalorder %s30, 1
      %p95 = por %p93, %p94
      %p97 = scmp.ne.s32.totalorder %s82, %s96
      %p98 = scmp.eq.s32.totalorder %s30, 0
      %p99 = por %p97, %p98
      %s101 = sadd.s32 %s100, 1
      %p104 = scmp.eq.s32.totalorder %s24, 1
      %p105 = scmp.ne.s32.totalorder %s100, %s102
      %p106 = scmp.eq.s32.totalorder %s24, 0
      %p107 = por %p105, %p106
      %p108 = scmp.ne.s32.totalorder %s100, %s102
      %p109 = scmp.eq.s32.totalorder %s29, 1
      %p110 = por %p108, %p109
      %p111 = scmp.ne.s32.totalorder %s102, %s103
      %p112 = scmp.eq.s32.totalorder %s29, 0
      %p113 = por %p111, %p112
      %p114 = scmp.ne.s32.totalorder %s102, %s103
      %p115 = scmp.eq.s32.totalorder %s30, 1
      %p116 = por %p114, %p115
      %p118 = scmp.ne.s32.totalorder %s103, %s117
      %p119 = scmp.eq.s32.totalorder %s30, 0
      %p120 = por %p118, %p119
      %s122 = sadd.s32 %s121, 1
      %p125 = scmp.eq.s32.totalorder %s24, 1
      %p126 = scmp.ne.s32.totalorder %s121, %s123
      %p127 = scmp.eq.s32.totalorder %s24, 0
      %p128 = por %p126, %p127
      %p129 = scmp.ne.s32.totalorder %s121, %s123
      %p130 = scmp.eq.s32.totalorder %s29, 1
      %p131 = por %p129, %p130
      %p132 = scmp.ne.s32.totalorder %s123, %s124
      %p133 = scmp.eq.s32.totalorder %s29, 0
      %p134 = por %p132, %p133
      %p135 = scmp.ne.s32.totalorder %s123, %s124
      %p136 = scmp.eq.s32.totalorder %s30, 1
      %p137 = por %p135, %p136
      %p139 = scmp.ne.s32.totalorder %s124, %s138
      %p140 = scmp.eq.s32.totalorder %s30, 0
      %p141 = por %p139, %p140
      %s143 = sadd.s32 %s142, 1
      %p146 = scmp.eq.s32.totalorder %s24, 1
      %p147 = scmp.ne.s32.totalorder %s142, %s144
      %p148 = scmp.eq.s32.totalorder %s24, 0
      %p149 = por %p147, %p148
      %p150 = scmp.ne.s32.totalorder %s142, %s144
      %p151 = scmp.eq.s32.totalorder %s29, 1
      %p152 = por %p150, %p151
      %p153 = scmp.ne.s32.totalorder %s144, %s145
      %p154 = scmp.eq.s32.totalorder %s29, 0
      %p155 = por %p153, %p154
      %p156 = scmp.ne.s32.totalorder %s144, %s145
      %p157 = scmp.eq.s32.totalorder %s30, 1
      %p158 = por %p156, %p157
      %p160 = scmp.ne.s32.totalorder %s145, %s159
      %p161 = scmp.eq.s32.totalorder %s30, 0
      %p162 = por %p160, %p161
      %s164 = sadd.s32 %s163, 1
      %p167 = scmp.eq.s32.totalorder %s24, 1
      %p168 = scmp.ne.s32.totalorder %s163, %s165
      %p169 = scmp.eq.s32.totalorder %s24, 0
      %p170 = por %p168, %p169
      %p171 = scmp.ne.s32.totalorder %s163, %s165
      %p172 = scmp.eq.s32.totalorder %s29, 1
      %p173 = por %p171, %p172
      %p174 = scmp.ne.s32.totalorder %s165, %s166
      %p175 = scmp.eq.s32.totalorder %s29, 0
      %p176 = por %p174, %p175
      %p177 = scmp.ne.s32.totalorder %s165, %s166
      %p178 = scmp.eq.s32.totalorder %s30, 1
      %p179 = por %p177, %p178
      %p181 = scmp.ne.s32.totalorder %s166, %s180
      %p182 = scmp.eq.s32.totalorder %s30, 0
      %p183 = por %p181, %p182
      %s185 = sadd.s32 %s184, 1
      %p188 = scmp.eq.s32.totalorder %s24, 1
      %p189 = scmp.ne.s32.totalorder %s184, %s186
      %p190 = scmp.eq.s32.totalorder %s24, 0
      %p191 = por %p189, %p190
      %p192 = scmp.ne.s32.totalorder %s184, %s186
      %p193 = scmp.eq.s32.totalorder %s29, 1
      %p194 = por %p192, %p193
      %p195 = scmp.ne.s32.totalorder %s186, %s187
      %p196 = scmp.eq.s32.totalorder %s29, 0
      %p197 = por %p195, %p196
      %p198 = scmp.ne.s32.totalorder %s186, %s187
      %p199 = scmp.eq.s32.totalorder %s30, 1
      %p200 = por %p198, %p199
      %p202 = scmp.ne.s32.totalorder %s187, %s201
      %p203 = scmp.eq.s32.totalorder %s30, 0
      %p204 = por %p202, %p203
      %s205 = ssub.s32 %s24, %s31
      %p206 = scmp.eq.s32.totalorder %s205, 0
      %s208 = sadd.s32 %s207, 1
      %s209 = scalar_select %p206, %s207, %s208
      %p212 = pneg %p206
      %p213 = scmp.eq.s32.totalorder %s24, 1
      %p214 = por %p212, %p213
      %p215 = scmp.ne.s32.totalorder %s207, %s210
      %p216 = scmp.eq.s32.totalorder %s24, 0
      %p217 = por %p215, %p216
      %p218 = scmp.ne.s32.totalorder %s207, %s210
      %p219 = scmp.eq.s32.totalorder %s29, 1
      %p220 = por %p218, %p219
      %p221 = scmp.ne.s32.totalorder %s210, %s211
      %p222 = scmp.eq.s32.totalorder %s29, 0
      %p223 = por %p221, %p222
      %p224 = scmp.ne.s32.totalorder %s210, %s211
      %p225 = scmp.eq.s32.totalorder %s30, 1
      %p226 = por %p224, %p225
      %p228 = scmp.ne.s32.totalorder %s211, %s227
      %p229 = scmp.eq.s32.totalorder %s30, 0
      %p230 = por %p228, %p229
      %p231 = scmp.le.s32.totalorder 1, %s24
      %p232 = scmp.lt.s32.totalorder %s24, 3
      %p233 = pnand %p231, %p232
      %p234 = pneg %p233
      // Predicated region
      $region9: #{_lambda_.1} parent=5 // pred_check
        _
      $region10: #{_lambda_.1} parent=5 // pred_check_branch
        %236 = sbr.rel (%p233) target = $region12
      $region11: #{_lambda_.1} parent=5 // pred_region
        %s237 = ssub.s32 %s24, 1
        // Predicated region
        $region13: #{_lambda_.1} parent=11 // pred_check
          %p238 = pneg %p71
        $region14: #{_lambda_.1} parent=11 // pred_check_branch
          %240 = sbr.rel (%p238) target = $region16
        $region15: #{_lambda_.1} parent=11 // pred_region
          %s242 = ssub.s32 512, 512
          %243 = vsyncadd [#allocation6], %s242
          %s244 = sshll.u32 [#allocation5], 4
          %s245 = int_to_ptr.vmem [resolvable:$true] %s244
          %250 = dma.hbm_to_vmem [thread:$0]  %s1, 512, %s245, [#allocation6], 128, 128, 8
        $region16: #{_lambda_.1} parent=11 // pred_fallthru
          _
        // Predicated region
        $region17: #{_lambda_.1} parent=11 // pred_check
          %p251 = pneg %p92
        $region18: #{_lambda_.1} parent=11 // pred_check_branch
          %253 = sbr.rel (%p251) target = $region20
        $region19: #{_lambda_.1} parent=11 // pred_region
          %s255 = ssub.s32 512, 512
          %256 = vsyncadd [#allocation6], %s255
          %s257 = sshll.u32 [#allocation7], 4
          %s258 = int_to_ptr.vmem [resolvable:$true] %s257
          %263 = dma.hbm_to_vmem [thread:$0]  %s2, 512, %s258, [#allocation6], 128, 128, 8
        $region20: #{_lambda_.1} parent=11 // pred_fallthru
          _
        // Predicated region
        $region21: #{_lambda_.1} parent=11 // pred_check
          %p264 = pneg %p113
        $region22: #{_lambda_.1} parent=11 // pred_check_branch
          %266 = sbr.rel (%p264) target = $region24
        $region23: #{_lambda_.1} parent=11 // pred_region
          %s268 = ssub.s32 512, 512
          %269 = vsyncadd [#allocation9], %s268
          %s270 = sshll.u32 [#allocation8], 4
          %s271 = int_to_ptr.vmem [resolvable:$true] %s270
          %276 = dma.hbm_to_vmem [thread:$0]  %s3, 512, %s271, [#allocation9], 128, 128, 8
        $region24: #{_lambda_.1} parent=11 // pred_fallthru
          _
        // Predicated region
        $region25: #{_lambda_.1} parent=11 // pred_check
          %p277 = pneg %p134
        $region26: #{_lambda_.1} parent=11 // pred_check_branch
          %279 = sbr.rel (%p277) target = $region28
        $region27: #{_lambda_.1} parent=11 // pred_region
          %s281 = ssub.s32 1536, 1536
          %282 = vsyncadd [#allocation9], %s281
          %s283 = sshll.u32 [#allocation10], 4
          %s284 = int_to_ptr.vmem [resolvable:$true] %s283
          %289 = dma.hbm_to_vmem [thread:$0]  %s4, 1536, %s284, [#allocation9], 128, 128, 8
        $region28: #{_lambda_.1} parent=11 // pred_fallthru
          _
        // Predicated region
        $region29: #{_lambda_.1} parent=11 // pred_check
          %p290 = pneg %p155
        $region30: #{_lambda_.1} parent=11 // pred_check_branch
          %292 = sbr.rel (%p290) target = $region32
        $region31: #{_lambda_.1} parent=11 // pred_region
          %s294 = ssub.s32 1536, 1536
          %295 = vsyncadd [#allocation12], %s294
          %s296 = sshll.u32 [#allocation11], 4
          %s297 = int_to_ptr.vmem [resolvable:$true] %s296
          %302 = dma.hbm_to_vmem [thread:$0]  %s5, 1536, %s297, [#allocation12], 128, 128, 8
        $region32: #{_lambda_.1} parent=11 // pred_fallthru
          _
        // Predicated region
        $region33: #{_lambda_.1} parent=11 // pred_check
          %p303 = pneg %p176
        $region34: #{_lambda_.1} parent=11 // pred_check_branch
          %305 = sbr.rel (%p303) target = $region36
        $region35: #{_lambda_.1} parent=11 // pred_region
          %s307 = ssub.s32 512, 512
          %308 = vsyncadd [#allocation12], %s307
          %s309 = sshll.u32 [#allocation13], 4
          %s310 = int_to_ptr.vmem [resolvable:$true] %s309
          %315 = dma.hbm_to_vmem [thread:$0]  %s6, 512, %s310, [#allocation12], 128, 128, 8
        $region36: #{_lambda_.1} parent=11 // pred_fallthru
          _
        // Predicated region
        $region37: #{_lambda_.1} parent=11 // pred_check
          %p316 = pneg %p197
        $region38: #{_lambda_.1} parent=11 // pred_check_branch
          %318 = sbr.rel (%p316) target = $region40
        $region39: #{_lambda_.1} parent=11 // pred_region
          %s320 = ssub.s32 512, 512
          %321 = vsyncadd [#allocation15], %s320
          %s322 = sshll.u32 [#allocation14], 4
          %s323 = int_to_ptr.vmem [resolvable:$true] %s322
          %328 = dma.hbm_to_vmem [thread:$0]  %s7, 512, %s323, [#allocation15], 128, 128, 8
        $region40: #{_lambda_.1} parent=11 // pred_fallthru
          _
      $region12: #{_lambda_.1} parent=5 // pred_fallthru
        _
      %p329 = scmp.lt.s32.totalorder %s24, 2
      // Predicated region
      $region41: #{_lambda_.1} parent=5 // pred_check
        %p330 = pneg %p329
      $region42: #{_lambda_.1} parent=5 // pred_check_branch
        %332 = sbr.rel (%p330) target = $region44
      $region43: #{_lambda_.1} parent=5 // pred_region
        // Predicated region
        $region45: #{_lambda_.1} parent=43 // pred_check
          %p333 = pneg %p44
        $region46: #{_lambda_.1} parent=43 // pred_check_branch
          %335 = sbr.rel (%p333) target = $region48
        $region47: #{_lambda_.1} parent=43 // pred_region
          %s336 = sand.u32 %s34, 1
          %s337 = scalar_lea.sflag [#allocation3], %s336
          %s338 = sand.u32 %s34, 1
          %s339 = smul.addr %s338, 64
          %s340 = scalar_lea.vmem [#allocation2], %s339
          %s342 = ssub.s32 1024, 1024
          %343 = vsyncadd %s337, %s342
          %s344 = smul.addr %s24, 8
          %s345 = smul.addr %s344, 128
          %s346 = scalar_lea.hbm %s0, %s345
          %s347 = sshll.u32 %s340, 4
          %s348 = int_to_ptr.vmem [resolvable:$true] %s347
          %353 = dma.hbm_to_vmem [thread:$0]  %s346, 1024, %s348, %s337, 256, 256, 16
        $region48: #{_lambda_.1} parent=43 // pred_fallthru
          _
      $region44: #{_lambda_.1} parent=5 // pred_fallthru
        _
      %p354 = scmp.le.s32.totalorder 1, %s24
      %p355 = scmp.lt.s32.totalorder %s24, 3
      %p356 = pnand %p354, %p355
      %p357 = pneg %p356
      // Predicated region
      $region49: #{_lambda_.1} parent=5 // pred_check
        _
      $region50: #{_lambda_.1} parent=5 // pred_check_branch
        %359 = sbr.rel (%p356) target = $region52
      $region51: #{_lambda_.1} parent=5 // pred_region
        %s360 = ssub.s32 %s24, 1
        %s361 = sand.u32 %s37, 1
        %s362 = scalar_lea.sflag [#allocation3], %s361
        %s363 = sand.u32 %s37, 1
        %s364 = smul.addr %s363, 64
        %s365 = scalar_lea.vmem [#allocation2], %s364
        // Predicated region
        $region53: #{_lambda_.1} parent=51 // pred_check
          %p366 = pneg %p50
        $region54: #{_lambda_.1} parent=51 // pred_check_branch
          %368 = sbr.rel (%p366) target = $region56
        $region55: #{_lambda_.1} parent=51 // pred_region
          %369 = dma.done %s362, 1024
        $region56: #{_lambda_.1} parent=51 // pred_fallthru
          _
        // Predicated region
        $region57: #{_lambda_.1} parent=51 // pred_check
          %p370 = pneg %p71
        $region58: #{_lambda_.1} parent=51 // pred_check_branch
          %372 = sbr.rel (%p370) target = $region60
        $region59: #{_lambda_.1} parent=51 // pred_region
          %373 = dma.done [#allocation6], 512
        $region60: #{_lambda_.1} parent=51 // pred_fallthru
          _
        // Predicated region
        $region61: #{_lambda_.1} parent=51 // pred_check
          %p374 = pneg %p92
        $region62: #{_lambda_.1} parent=51 // pred_check_branch
          %376 = sbr.rel (%p374) target = $region64
        $region63: #{_lambda_.1} parent=51 // pred_region
          %377 = dma.done [#allocation6], 512
        $region64: #{_lambda_.1} parent=51 // pred_fallthru
          _
        // Predicated region
        $region65: #{_lambda_.1} parent=51 // pred_check
          %p378 = pneg %p113
        $region66: #{_lambda_.1} parent=51 // pred_check_branch
          %380 = sbr.rel (%p378) target = $region68
        $region67: #{_lambda_.1} parent=51 // pred_region
          %381 = dma.done [#allocation9], 512
        $region68: #{_lambda_.1} parent=51 // pred_fallthru
          _
        // Predicated region
        $region69: #{_lambda_.1} parent=51 // pred_check
          %p382 = pneg %p134
        $region70: #{_lambda_.1} parent=51 // pred_check_branch
          %384 = sbr.rel (%p382) target = $region72
        $region71: #{_lambda_.1} parent=51 // pred_region
          %385 = dma.done [#allocation9], 1536
        $region72: #{_lambda_.1} parent=51 // pred_fallthru
          _
        // Predicated region
        $region73: #{_lambda_.1} parent=51 // pred_check
          %p386 = pneg %p155
        $region74: #{_lambda_.1} parent=51 // pred_check_branch
          %388 = sbr.rel (%p386) target = $region76
        $region75: #{_lambda_.1} parent=51 // pred_region
          %389 = dma.done [#allocation12], 1536
        $region76: #{_lambda_.1} parent=51 // pred_fallthru
          _
        // Predicated region
        $region77: #{_lambda_.1} parent=51 // pred_check
          %p390 = pneg %p176
        $region78: #{_lambda_.1} parent=51 // pred_check_branch
          %392 = sbr.rel (%p390) target = $region80
        $region79: #{_lambda_.1} parent=51 // pred_region
          %393 = dma.done [#allocation12], 512
        $region80: #{_lambda_.1} parent=51 // pred_fallthru
          _
        // Predicated region
        $region81: #{_lambda_.1} parent=51 // pred_check
          %p394 = pneg %p197
        $region82: #{_lambda_.1} parent=51 // pred_check_branch
          %396 = sbr.rel (%p394) target = $region84
        $region83: #{_lambda_.1} parent=51 // pred_region
          %397 = dma.done [#allocation15], 512
        $region84: #{_lambda_.1} parent=51 // pred_fallthru
          _
        %s398 = sand.u32 %s37, 1
        %s399 = scalar_lea.sflag [#allocation3], %s398
        %s400 = sand.u32 %s37, 1
        %s401 = smul.addr %s400, 64
        %s402 = scalar_lea.vmem [#allocation2], %s401
        %p403 = pneg %p50
        %p404 = pneg %p47
        %p405 = pneg %p71
        %p406 = pneg %p68
        %p407 = pneg %p92
        %p408 = pneg %p89
        %p409 = pneg %p113
        %p410 = pneg %p110
        %p411 = pneg %p134
        %p412 = pneg %p131
        %p413 = pneg %p155
        %p414 = pneg %p152
        %p415 = pneg %p176
        %p416 = pneg %p173
        %p417 = pneg %p197
        %p418 = pneg %p194
        %p419 = pneg %p223
        %p420 = pneg %p220
        %s421 = sand.u32 %s210, 1
        %s422 = scalar_lea.sflag [#allocation4], %s421
        %s423 = sand.u32 %s210, 1
        %s424 = smul.addr %s423, 64
        %s425 = scalar_lea.vmem [#allocation16], %s424
        %v426 = vld [vmem:[#allocation5] sm:$0xff]
        %v427 = vld [vmem:[#allocation5 + $0x8] sm:$0xff]
        %v428 = vld [vmem:[#allocation5 + $0x10] sm:$0xff]
        %v429 = vld [vmem:[#allocation5 + $0x18] sm:$0xff]
        %v430 = vld [vmem:[#allocation7] sm:$0xff]
        %v431 = vld [vmem:[#allocation7 + $0x8] sm:$0xff]
        %v432 = vld [vmem:[#allocation7 + $0x10] sm:$0xff]
        %v433 = vld [vmem:[#allocation7 + $0x18] sm:$0xff]
        %v434 = vld [vmem:[#allocation8] sm:$0xff]
        %v435 = vld [vmem:[#allocation8 + $0x8] sm:$0xff]
        %v436 = vld [vmem:[#allocation8 + $0x10] sm:$0xff]
        %v437 = vld [vmem:[#allocation8 + $0x18] sm:$0xff]
        %v438 = vld [vmem:[#allocation10] sm:$0xff]
        %v439 = vld [vmem:[#allocation10 + $0x8] sm:$0xff]
        %v440 = vld [vmem:[#allocation10 + $0x10] sm:$0xff]
        %v441 = vld [vmem:[#allocation10 + $0x18] sm:$0xff]
        %v442 = vld [vmem:[#allocation10 + $0x20] sm:$0xff]
        %v443 = vld [vmem:[#allocation10 + $0x28] sm:$0xff]
        %v444 = vld [vmem:[#allocation10 + $0x30] sm:$0xff]
        %v445 = vld [vmem:[#allocation10 + $0x38] sm:$0xff]
        %v446 = vld [vmem:[#allocation10 + $0x40] sm:$0xff]
        %v447 = vld [vmem:[#allocation10 + $0x48] sm:$0xff]
        %v448 = vld [vmem:[#allocation10 + $0x50] sm:$0xff]
        %v449 = vld [vmem:[#allocation10 + $0x58] sm:$0xff]
        %v450 = vld [vmem:[#allocation11] sm:$0xff]
        %v451 = vld [vmem:[#allocation11 + $0x8] sm:$0xff]
        %v452 = vld [vmem:[#allocation11 + $0x10] sm:$0xff]
        %v453 = vld [vmem:[#allocation11 + $0x18] sm:$0xff]
        %v454 = vld [vmem:[#allocation11 + $0x20] sm:$0xff]
        %v455 = vld [vmem:[#allocation11 + $0x28] sm:$0xff]
        %v456 = vld [vmem:[#allocation11 + $0x30] sm:$0xff]
        %v457 = vld [vmem:[#allocation11 + $0x38] sm:$0xff]
        %v458 = vld [vmem:[#allocation11 + $0x40] sm:$0xff]
        %v459 = vld [vmem:[#allocation11 + $0x48] sm:$0xff]
        %v460 = vld [vmem:[#allocation11 + $0x50] sm:$0xff]
        %v461 = vld [vmem:[#allocation11 + $0x58] sm:$0xff]
        %v462 = vld [vmem:[#allocation13] sm:$0xff]
        %v463 = vld [vmem:[#allocation13 + $0x8] sm:$0xff]
        %v464 = vld [vmem:[#allocation13 + $0x10] sm:$0xff]
        %v465 = vld [vmem:[#allocation13 + $0x18] sm:$0xff]
        %v466 = vld [vmem:[#allocation14] sm:$0xff]
        %v467 = vld [vmem:[#allocation14 + $0x8] sm:$0xff]
        %v468 = vld [vmem:[#allocation14 + $0x10] sm:$0xff]
        %v469 = vld [vmem:[#allocation14 + $0x18] sm:$0xff]
        %v470 = vld [vmem:[%s365] sm:$0xff]
        %v471 = vld [vmem:[%s365 + $0x8] sm:$0xff]
        %v472 = vld [vmem:[%s365 + $0x10] sm:$0xff]
        %v473 = vld [vmem:[%s365 + $0x18] sm:$0xff]
        %v474 = vld [vmem:[%s365 + $0x20] sm:$0xff]
        %v475 = vld [vmem:[%s365 + $0x28] sm:$0xff]
        %v476 = vld [vmem:[%s365 + $0x30] sm:$0xff]
        %v477 = vld [vmem:[%s365 + $0x38] sm:$0xff]
        %v478 = vadd.f32 %v470, %v471
        %479 = vadd.xlane.f32.xlu0 %v478
        %v480 = vpop.xlane.xlu0 %479
        %v481 = vadd.f32 %v472, %v473
        %482 = vadd.xlane.f32.xlu0 %v481
        %v483 = vpop.xlane.xlu0 %482
        %v484 = vadd.f32 %v474, %v475
        %485 = vadd.xlane.f32.xlu0 %v484
        %v486 = vpop.xlane.xlu0 %485
        %v487 = vadd.f32 %v476, %v477
        %488 = vadd.xlane.f32.xlu0 %v487
        %v489 = vpop.xlane.xlu0 %488
        %vm490 = vcmask 261120
        %v492 = vsel %vm490, %v434, 0
        %v495 = vsel %vm490, %v435, 0
        %v498 = vsel %vm490, %v436, 0
        %v501 = vsel %vm490, %v437, 0
        %503 = vmatprep.subr.mxu0 0.0
        %504 = vmatpush1.msra.mxu0 %v480
        %505 = vmatprep.subr.mxu0 0.0
        %506 = vmatpush1.msra.mxu0 %v483
        %507 = vmatprep.subr.mxu0 0.0
        %508 = vmatpush1.msra.mxu0 %v486
        %509 = vmatprep.subr.mxu0 0.0
        %510 = vmatpush1.msra.mxu0 %v489
        %511 = vmatprep.subr.mxu0 0.0
        %512 = vmatpush1.msra.mxu0 0.0
        %513 = vmatprep.subr.mxu0 0.0
        %514 = vmatpush1.msra.mxu0 0.0
        %515 = vmatprep.subr.mxu0 0.0
        %516 = vmatpush1.msra.mxu0 0.0
        %517 = vmatprep.subr.mxu0 0.0
        %518 = vmatpush1.msra.mxu0 0.0
        %519 = vmatprep.subr.mxu0 0.0
        %520 = vmatpush1.msra.mxu0 0.0
        %521 = vmatprep.subr.mxu0 0.0
        %522 = vmatpush1.msra.mxu0 0.0
        %523 = vmatprep.subr.mxu0 0.0
        %524 = vmatpush1.msra.mxu0 0.0
        %525 = vmatprep.subr.mxu0 0.0
        %526 = vmatpush1.msra.mxu0 0.0
        %527 = vmatprep.subr.mxu0 0.0
        %528 = vmatpush1.msra.mxu0 0.0
        %529 = vmatprep.subr.mxu0 0.0
        %530 = vmatpush1.msra.mxu0 0.0
        %531 = vmatprep.subr.mxu0 0.0
        %532 = vmatpush1.msra.mxu0 0.0
        %533 = vmatprep.subr.mxu0 0.0
        %534 = vmatpush1.msra.mxu0 0.0
        %535 = vmatprep.subr.mxu0 0.0
        %536 = vmatpush1.msra.mxu0 0.0
        %537 = vmatprep.subr.mxu0 0.0
        %538 = vmatpush1.msra.mxu0 0.0
        %539 = vmatprep.subr.mxu0 0.0
        %540 = vmatpush1.msra.mxu0 0.0
        %541 = vmatprep.subr.mxu0 0.0
        %542 = vmatpush1.msra.mxu0 0.0
        %543 = vmatprep.subr.mxu0 0.0
        %544 = vmatpush1.msra.mxu0 0.0
        %545 = vmatprep.subr.mxu0 0.0
        %546 = vmatpush1.msra.mxu0 0.0
        %547 = vmatprep.subr.mxu0 0.0
        %548 = vmatpush1.msra.mxu0 0.0
        %549 = vmatprep.subr.mxu0 0.0
        %550 = vmatpush1.msra.mxu0 0.0
        %551 = vmatprep.subr.mxu0 0.0
        %552 = vmatpush1.msra.mxu0 0.0
        %553 = vmatprep.subr.mxu0 0.0
        %554 = vmatpush1.msra.mxu0 0.0
        %555 = vmatprep.subr.mxu0 0.0
        %556 = vmatpush1.msra.mxu0 0.0
        %557 = vmatprep.subr.mxu0 0.0
        %558 = vmatpush1.msra.mxu0 0.0
        %559 = vmatprep.subr.mxu0 0.0
        %560 = vmatpush1.msra.mxu0 0.0
        %561 = vmatprep.subr.mxu0 0.0
        %562 = vmatpush1.msra.mxu0 0.0
        %563 = vmatprep.subr.mxu0 0.0
        %564 = vmatpush1.msra.mxu0 0.0
        %565 = vmatprep.subr.mxu0 0.0
        %566 = vmatpush1.msra.mxu0 0.0
        %567 = vmatprep.mubr.f32.mxu0 0.0
        %568 = vmatmul.mubr.f32.gmra.mrb[0].mxu0 %v492
        %v569 = vpop.f32.mrb[0].mxu0
        %v570 = vadd.f32 0.0, %v569
        %v571 = vpop.f32.mrb[0].mxu0
        %572 = vmatprep.mubr.f32.mxu0 0.0
        %573 = vmatmul.mubr.f32.gmra.mrb[0].mxu0 %v495
        %v574 = vpop.f32.mrb[0].mxu0
        %v575 = vadd.f32 0.0, %v574
        %v576 = vpop.f32.mrb[0].mxu0
        %577 = vmatprep.mubr.f32.mxu0 0.0
        %578 = vmatmul.mubr.f32.gmra.mrb[0].mxu0 %v498
        %v579 = vpop.f32.mrb[0].mxu0
        %v580 = vadd.f32 0.0, %v579
        %v581 = vpop.f32.mrb[0].mxu0
        %582 = vmatprep.mubr.f32.mxu0 0.0
        %583 = vmatmul.mubr.f32.gmra.mrb[0].mxu0 %v501
        %v584 = vpop.f32.mrb[0].mxu0
        %v585 = vadd.f32 0.0, %v584
        %v586 = vpop.f32.mrb[0].mxu0
        %587 = vdwg.mxu0
        %589 = vset.pattern.permute.xlu0 0
        %590 = vperm.xlu0 %589, %v570
        %v591 = vpop.permute.xlu0 %590
        %594 = vset.pattern.permute.xlu0 0
        %595 = vperm.xlu0 %594, %v575
        %v596 = vpop.permute.xlu0 %595
        %599 = vset.pattern.permute.xlu0 0
        %600 = vperm.xlu0 %599, %v580
        %v601 = vpop.permute.xlu0 %600
        %604 = vset.pattern.permute.xlu0 0
        %605 = vperm.xlu0 %604, %v585
        %v606 = vpop.permute.xlu0 %605
        %v608 = vsub.f32 %v470, %v591
        %v609 = vsub.f32 %v471, %v591
        %v610 = vsub.f32 %v472, %v596
        %v611 = vsub.f32 %v473, %v596
        %v612 = vsub.f32 %v474, %v601
        %v613 = vsub.f32 %v475, %v601
        %v614 = vsub.f32 %v476, %v606
        %v615 = vsub.f32 %v477, %v606
        %v616 = vmul.f32 %v608, %v608
        %v617 = vmul.f32 %v609, %v609
        %v618 = vmul.f32 %v610, %v610
        %v619 = vmul.f32 %v611, %v611
        %v620 = vmul.f32 %v612, %v612
        %v621 = vmul.f32 %v613, %v613
        %v622 = vmul.f32 %v614, %v614
        %v623 = vmul.f32 %v615, %v615
        %v624 = vadd.f32 %v616, %v617
        %625 = vadd.xlane.f32.xlu0 %v624
        %v626 = vpop.xlane.xlu0 %625
        %v627 = vadd.f32 %v618, %v619
        %628 = vadd.xlane.f32.xlu0 %v627
        %v629 = vpop.xlane.xlu0 %628
        %v630 = vadd.f32 %v620, %v621
        %631 = vadd.xlane.f32.xlu0 %v630
        %v632 = vpop.xlane.xlu0 %631
        %v633 = vadd.f32 %v622, %v623
        %634 = vadd.xlane.f32.xlu0 %v633
        %v635 = vpop.xlane.xlu0 %634
        %636 = vmatprep.subr.mxu0 0.0
        %637 = vmatpush1.msra.mxu0 %v626
        %638 = vmatprep.subr.mxu0 0.0
        %639 = vmatpush1.msra.mxu0 %v629
        %640 = vmatprep.subr.mxu0 0.0
        %641 = vmatpush1.msra.mxu0 %v632
        %642 = vmatprep.subr.mxu0 0.0
        %643 = vmatpush1.msra.mxu0 %v635
        %644 = vmatprep.subr.mxu0 0.0
        %645 = vmatpush1.msra.mxu0 0.0
        %646 = vmatprep.subr.mxu0 0.0
        %647 = vmatpush1.msra.mxu0 0.0
        %648 = vmatprep.subr.mxu0 0.0
        %649 = vmatpush1.msra.mxu0 0.0
        %650 = vmatprep.subr.mxu0 0.0
        %651 = vmatpush1.msra.mxu0 0.0
        %652 = vmatprep.subr.mxu0 0.0
        %653 = vmatpush1.msra.mxu0 0.0
        %654 = vmatprep.subr.mxu0 0.0
        %655 = vmatpush1.msra.mxu0 0.0
        %656 = vmatprep.subr.mxu0 0.0
        %657 = vmatpush1.msra.mxu0 0.0
        %658 = vmatprep.subr.mxu0 0.0
        %659 = vmatpush1.msra.mxu0 0.0
        %660 = vmatprep.subr.mxu0 0.0
        %661 = vmatpush1.msra.mxu0 0.0
        %662 = vmatprep.subr.mxu0 0.0
        %663 = vmatpush1.msra.mxu0 0.0
        %664 = vmatprep.subr.mxu0 0.0
        %665 = vmatpush1.msra.mxu0 0.0
        %666 = vmatprep.subr.mxu0 0.0
        %667 = vmatpush1.msra.mxu0 0.0
        %668 = vmatprep.subr.mxu0 0.0
        %669 = vmatpush1.msra.mxu0 0.0
        %670 = vmatprep.subr.mxu0 0.0
        %671 = vmatpush1.msra.mxu0 0.0
        %672 = vmatprep.subr.mxu0 0.0
        %673 = vmatpush1.msra.mxu0 0.0
        %674 = vmatprep.subr.mxu0 0.0
        %675 = vmatpush1.msra.mxu0 0.0
        %676 = vmatprep.subr.mxu0 0.0
        %677 = vmatpush1.msra.mxu0 0.0
        %678 = vmatprep.subr.mxu0 0.0
        %679 = vmatpush1.msra.mxu0 0.0
        %680 = vmatprep.subr.mxu0 0.0
        %681 = vmatpush1.msra.mxu0 0.0
        %682 = vmatprep.subr.mxu0 0.0
        %683 = vmatpush1.msra.mxu0 0.0
        %684 = vmatprep.subr.mxu0 0.0
        %685 = vmatpush1.msra.mxu0 0.0
        %686 = vmatprep.subr.mxu0 0.0
        %687 = vmatpush1.msra.mxu0 0.0
        %688 = vmatprep.subr.mxu0 0.0
        %689 = vmatpush1.msra.mxu0 0.0
        %690 = vmatprep.subr.mxu0 0.0
        %691 = vmatpush1.msra.mxu0 0.0
        %692 = vmatprep.subr.mxu0 0.0
        %693 = vmatpush1.msra.mxu0 0.0
        %694 = vmatprep.subr.mxu0 0.0
        %695 = vmatpush1.msra.mxu0 0.0
        %696 = vmatprep.subr.mxu0 0.0
        %697 = vmatpush1.msra.mxu0 0.0
        %698 = vmatprep.subr.mxu0 0.0
        %699 = vmatpush1.msra.mxu0 0.0
        %700 = vmatprep.mubr.f32.mxu0 0.0
        %701 = vmatmul.mubr.f32.gmra.mrb[0].mxu0 %v492
        %v702 = vpop.f32.mrb[0].mxu0
        %v703 = vadd.f32 1e-05, %v702
        %v704 = vpop.f32.mrb[0].mxu0
        %705 = vmatprep.mubr.f32.mxu0 0.0
        %706 = vmatmul.mubr.f32.gmra.mrb[0].mxu0 %v495
        %v707 = vpop.f32.mrb[0].mxu0
        %v708 = vadd.f32 1e-05, %v707
        %v709 = vpop.f32.mrb[0].mxu0
        %710 = vmatprep.mubr.f32.mxu0 0.0
        %711 = vmatmul.mubr.f32.gmra.mrb[0].mxu0 %v498
        %v712 = vpop.f32.mrb[0].mxu0
        %v713 = vadd.f32 1e-05, %v712
        %v714 = vpop.f32.mrb[0].mxu0
        %715 = vmatprep.mubr.f32.mxu0 0.0
        %716 = vmatmul.mubr.f32.gmra.mrb[0].mxu0 %v501
        %v717 = vpop.f32.mrb[0].mxu0
        %v718 = vadd.f32 1e-05, %v717
        %v719 = vpop.f32.mrb[0].mxu0
        %720 = vdwg.mxu0
        %v721 = vrsqrt.pop %v703
        %v722 = vrsqrt.pop %v708
        %v723 = vrsqrt.pop %v713
        %v724 = vrsqrt.pop %v718
        %v725 = vmul.f32 %v721, %v426
        %v726 = vmul.f32 %v722, %v427
        %v727 = vmul.f32 %v723, %v428
        %v728 = vmul.f32 %v724, %v429
        %730 = vset.pattern.permute.xlu0 0
        %731 = vperm.xlu0 %730, %v725
        %v732 = vpop.permute.xlu0 %731
        %735 = vset.pattern.permute.xlu0 0
        %736 = vperm.xlu0 %735, %v726
        %v737 = vpop.permute.xlu0 %736
        %740 = vset.pattern.permute.xlu0 0
        %741 = vperm.xlu0 %740, %v727
        %v742 = vpop.permute.xlu0 %741
        %745 = vset.pattern.permute.xlu0 0
        %746 = vperm.xlu0 %745, %v728
        %v747 = vpop.permute.xlu0 %746
        %v749 = vmul.f32 %v608, %v732
        %v750 = vmul.f32 %v609, %v732
        %v751 = vmul.f32 %v610, %v737
        %v752 = vmul.f32 %v611, %v737
        %v753 = vmul.f32 %v612, %v742
        %v754 = vmul.f32 %v613, %v742
        %v755 = vmul.f32 %v614, %v747
        %v756 = vmul.f32 %v615, %v747
        %758 = vset.pattern.permute.xlu0 0
        %759 = vperm.xlu0 %758, %v430
        %v760 = vpop.permute.xlu0 %759
        %763 = vset.pattern.permute.xlu0 0
        %764 = vperm.xlu0 %763, %v431
        %v765 = vpop.permute.xlu0 %764
        %768 = vset.pattern.permute.xlu0 0
        %769 = vperm.xlu0 %768, %v432
        %v770 = vpop.permute.xlu0 %769
        %773 = vset.pattern.permute.xlu0 0
        %774 = vperm.xlu0 %773, %v433
        %v775 = vpop.permute.xlu0 %774
        %v777 = vadd.f32 %v749, %v760
        %v778 = vadd.f32 %v750, %v760
        %v779 = vadd.f32 %v751, %v765
        %v780 = vadd.f32 %v752, %v765
        %v781 = vadd.f32 %v753, %v770
        %v782 = vadd.f32 %v754, %v770
        %v783 = vadd.f32 %v755, %v775
        %v784 = vadd.f32 %v756, %v775
        %786 = vset.pattern.permute.xlu0 0
        %787 = vperm.xlu0 %786, %v450
        %v788 = vpop.permute.xlu0 %787
        %791 = vset.pattern.permute.xlu0 0
        %792 = vperm.xlu0 %791, %v451
        %v793 = vpop.permute.xlu0 %792
        %796 = vset.pattern.permute.xlu0 0
        %797 = vperm.xlu0 %796, %v452
        %v798 = vpop.permute.xlu0 %797
        %801 = vset.pattern.permute.xlu0 0
        %802 = vperm.xlu0 %801, %v453
        %v803 = vpop.permute.xlu0 %802
        %806 = vset.pattern.permute.xlu0 0
        %807 = vperm.xlu0 %806, %v454
        %v808 = vpop.permute.xlu0 %807
        %811 = vset.pattern.permute.xlu0 0
        %812 = vperm.xlu0 %811, %v455
        %v813 = vpop.permute.xlu0 %812
        %816 = vset.pattern.permute.xlu0 0
        %817 = vperm.xlu0 %816, %v456
        %v818 = vpop.permute.xlu0 %817
        %821 = vset.pattern.permute.xlu0 0
        %822 = vperm.xlu0 %821, %v457
        %v823 = vpop.permute.xlu0 %822
        %826 = vset.pattern.permute.xlu0 0
        %827 = vperm.xlu0 %826, %v458
        %v828 = vpop.permute.xlu0 %827
        %831 = vset.pattern.permute.xlu0 0
        %832 = vperm.xlu0 %831, %v459
        %v833 = vpop.permute.xlu0 %832
        %836 = vset.pattern.permute.xlu0 0
        %837 = vperm.xlu0 %836, %v460
        %v838 = vpop.permute.xlu0 %837
        %841 = vset.pattern.permute.xlu0 0
        %842 = vperm.xlu0 %841, %v461
        %v843 = vpop.permute.xlu0 %842
        %v846 = vsel %vm490, %v438, 0
        %v849 = vsel %vm490, %v439, 0
        %v852 = vsel %vm490, %v440, 0
        %v855 = vsel %vm490, %v441, 0
        %v858 = vsel %vm490, %v442, 0
        %v861 = vsel %vm490, %v443, 0
        %v864 = vsel %vm490, %v444, 0
        %v867 = vsel %vm490, %v445, 0
        %v870 = vsel %vm490, %v446, 0
        %v873 = vsel %vm490, %v447, 0
        %v876 = vsel %vm490, %v448, 0
        %v879 = vsel %vm490, %v449, 0
        %881 = vmatprep.subr.mxu0 %v778
        %882 = vmatpush1.msra.mxu0 %v777
        %883 = vmatprep.subr.mxu0 %v780
        %884 = vmatpush1.msra.mxu0 %v779
        %885 = vmatprep.subr.mxu0 %v782
        %886 = vmatpush1.msra.mxu0 %v781
        %887 = vmatprep.subr.mxu0 %v784
        %888 = vmatpush1.msra.mxu0 %v783
        %889 = vmatprep.subr.mxu0 0.0
        %890 = vmatpush1.msra.mxu0 0.0
        %891 = vmatprep.subr.mxu0 0.0
        %892 = vmatpush1.msra.mxu0 0.0
        %893 = vmatprep.subr.mxu0 0.0
        %894 = vmatpush1.msra.mxu0 0.0
        %895 = vmatprep.subr.mxu0 0.0
        %896 = vmatpush1.msra.mxu0 0.0
        %897 = vmatprep.subr.mxu0 0.0
        %898 = vmatpush1.msra.mxu0 0.0
        %899 = vmatprep.subr.mxu0 0.0
        %900 = vmatpush1.msra.mxu0 0.0
        %901 = vmatprep.subr.mxu0 0.0
        %902 = vmatpush1.msra.mxu0 0.0
        %903 = vmatprep.subr.mxu0 0.0
        %904 = vmatpush1.msra.mxu0 0.0
        %905 = vmatprep.subr.mxu0 0.0
        %906 = vmatpush1.msra.mxu0 0.0
        %907 = vmatprep.subr.mxu0 0.0
        %908 = vmatpush1.msra.mxu0 0.0
        %909 = vmatprep.subr.mxu0 0.0
        %910 = vmatpush1.msra.mxu0 0.0
        %911 = vmatprep.subr.mxu0 0.0
        %912 = vmatpush1.msra.mxu0 0.0
        %913 = vmatprep.subr.mxu0 0.0
        %914 = vmatpush1.msra.mxu0 0.0
        %915 = vmatprep.subr.mxu0 0.0
        %916 = vmatpush1.msra.mxu0 0.0
        %917 = vmatprep.subr.mxu0 0.0
        %918 = vmatpush1.msra.mxu0 0.0
        %919 = vmatprep.subr.mxu0 0.0
        %920 = vmatpush1.msra.mxu0 0.0
        %921 = vmatprep.subr.mxu0 0.0
        %922 = vmatpush1.msra.mxu0 0.0
        %923 = vmatprep.subr.mxu0 0.0
        %924 = vmatpush1.msra.mxu0 0.0
        %925 = vmatprep.subr.mxu0 0.0
        %926 = vmatpush1.msra.mxu0 0.0
        %927 = vmatprep.subr.mxu0 0.0
        %928 = vmatpush1.msra.mxu0 0.0
        %929 = vmatprep.subr.mxu0 0.0
        %930 = vmatpush1.msra.mxu0 0.0
        %931 = vmatprep.subr.mxu0 0.0
        %932 = vmatpush1.msra.mxu0 0.0
        %933 = vmatprep.subr.mxu0 0.0
        %934 = vmatpush1.msra.mxu0 0.0
        %935 = vmatprep.subr.mxu0 0.0
        %936 = vmatpush1.msra.mxu0 0.0
        %937 = vmatprep.subr.mxu0 0.0
        %938 = vmatpush1.msra.mxu0 0.0
        %939 = vmatprep.subr.mxu0 0.0
        %940 = vmatpush1.msra.mxu0 0.0
        %941 = vmatprep.subr.mxu0 0.0
        %942 = vmatpush1.msra.mxu0 0.0
        %943 = vmatprep.subr.mxu0 0.0
        %944 = vmatpush1.msra.mxu0 0.0
        %945 = vmatprep.mubr.f32.mxu0 0.0
        %946 = vmatmul.mubr.f32.gmra.mrb[0].mxu0 %v846
        %v947 = vpop.f32.mrb[0].mxu0
        %v948 = vadd.f32 %v788, %v947
        %v949 = vpop.f32.mrb[0].mxu0
        %v950 = vadd.f32 %v788, %v949
        %951 = vmatprep.mubr.f32.mxu0 0.0
        %952 = vmatmul.mubr.f32.gmra.mrb[0].mxu0 %v849
        %v953 = vpop.f32.mrb[0].mxu0
        %v954 = vadd.f32 %v793, %v953
        %v955 = vpop.f32.mrb[0].mxu0
        %v956 = vadd.f32 %v793, %v955
        %957 = vmatprep.mubr.f32.mxu0 0.0
        %958 = vmatmul.mubr.f32.gmra.mrb[0].mxu0 %v852
        %v959 = vpop.f32.mrb[0].mxu0
        %v960 = vadd.f32 %v798, %v959
        %v961 = vpop.f32.mrb[0].mxu0
        %v962 = vadd.f32 %v798, %v961
        %963 = vmatprep.mubr.f32.mxu0 0.0
        %964 = vmatmul.mubr.f32.gmra.mrb[0].mxu0 %v855
        %v965 = vpop.f32.mrb[0].mxu0
        %v966 = vadd.f32 %v803, %v965
        %v967 = vpop.f32.mrb[0].mxu0
        %v968 = vadd.f32 %v803, %v967
        %969 = vmatprep.mubr.f32.mxu0 0.0
        %970 = vmatmul.mubr.f32.gmra.mrb[0].mxu0 %v858
        %v971 = vpop.f32.mrb[0].mxu0
        %v972 = vadd.f32 %v808, %v971
        %v973 = vpop.f32.mrb[0].mxu0
        %v974 = vadd.f32 %v808, %v973
        %975 = vmatprep.mubr.f32.mxu0 0.0
        %976 = vmatmul.mubr.f32.gmra.mrb[0].mxu0 %v861
        %v977 = vpop.f32.mrb[0].mxu0
        %v978 = vadd.f32 %v813, %v977
        %v979 = vpop.f32.mrb[0].mxu0
        %v980 = vadd.f32 %v813, %v979
        %981 = vmatprep.mubr.f32.mxu0 0.0
        %982 = vmatmul.mubr.f32.gmra.mrb[0].mxu0 %v864
        %v983 = vpop.f32.mrb[0].mxu0
        %v984 = vadd.f32 %v818, %v983
        %v985 = vpop.f32.mrb[0].mxu0
        %v986 = vadd.f32 %v818, %v985
        %987 = vmatprep.mubr.f32.mxu0 0.0
        %988 = vmatmul.mubr.f32.gmra.mrb[0].mxu0 %v867
        %v989 = vpop.f32.mrb[0].mxu0
        %v990 = vadd.f32 %v823, %v989
        %v991 = vpop.f32.mrb[0].mxu0
        %v992 = vadd.f32 %v823, %v991
        %993 = vmatprep.mubr.f32.mxu0 0.0
        %994 = vmatmul.mubr.f32.gmra.mrb[0].mxu0 %v870
        %v995 = vpop.f32.mrb[0].mxu0
        %v996 = vadd.f32 %v828, %v995
        %v997 = vpop.f32.mrb[0].mxu0
        %v998 = vadd.f32 %v828, %v997
        %999 = vmatprep.mubr.f32.mxu0 0.0
        %1000 = vmatmul.mubr.f32.gmra.mrb[0].mxu0 %v873
        %v1001 = vpop.f32.mrb[0].mxu0
        %v1002 = vadd.f32 %v833, %v1001
        %v1003 = vpop.f32.mrb[0].mxu0
        %v1004 = vadd.f32 %v833, %v1003
        %1005 = vmatprep.mubr.f32.mxu0 0.0
        %1006 = vmatmul.mubr.f32.gmra.mrb[0].mxu0 %v876
        %v1007 = vpop.f32.mrb[0].mxu0
        %v1008 = vadd.f32 %v838, %v1007
        %v1009 = vpop.f32.mrb[0].mxu0
        %v1010 = vadd.f32 %v838, %v1009
        %1011 = vmatprep.mubr.f32.mxu0 0.0
        %1012 = vmatmul.mubr.f32.gmra.mrb[0].mxu0 %v879
        %v1013 = vpop.f32.mrb[0].mxu0
        %v1014 = vadd.f32 %v843, %v1013
        %v1015 = vpop.f32.mrb[0].mxu0
        %v1016 = vadd.f32 %v843, %v1015
        %1017 = vdwg.mxu0
        %1018 = vxpose.xlu0.b32.start [1/16] %v972, 128
        %1019 = vxpose.xlu0.b32.cont [2/16] %v978, 128
        %1020 = vxpose.xlu0.b32.cont [3/16] %v984, 128
        %1021 = vxpose.xlu0.b32.cont [4/16] %v990, 128
        %1022 = vxpose.xlu0.b32.cont [5/16] 0.0, 128
        %1023 = vxpose.xlu0.b32.cont [6/16] 0.0, 128
        %1024 = vxpose.xlu0.b32.cont [7/16] 0.0, 128
        %1025 = vxpose.xlu0.b32.cont [8/16] 0.0, 128
        %1026 = vxpose.xlu0.b32.cont [9/16] 0.0, 128
        %1027 = vxpose.xlu0.b32.cont [10/16] 0.0, 128
        %1028 = vxpose.xlu0.b32.cont [11/16] 0.0, 128
        %1029 = vxpose.xlu0.b32.cont [12/16] 0.0, 128
        %1030 = vxpose.xlu0.b32.cont [13/16] 0.0, 128
        %1031 = vxpose.xlu0.b32.cont [14/16] 0.0, 128
        %1032 = vxpose.xlu0.b32.cont [15/16] 0.0, 128
        %1033 = vxpose.xlu0.b32.end [16/16] 0.0, 128
        %v1034 = vpop.trf.xlu0
        %v1035 = vpop.trf.xlu0
        %v1036 = vpop.trf.xlu0
        %v1037 = vpop.trf.xlu0
        %v1038 = vpop.trf.xlu0
        %v1039 = vpop.trf.xlu0
        %v1040 = vpop.trf.xlu0
        %v1041 = vpop.trf.xlu0
        %v1042 = vpop.trf.xlu0
        %v1043 = vpop.trf.xlu0
        %v1044 = vpop.trf.xlu0
        %v1045 = vpop.trf.xlu0
        %v1046 = vpop.trf.xlu0
        %v1047 = vpop.trf.xlu0
        %v1048 = vpop.trf.xlu0
        %v1049 = vpop.trf.xlu0
        %1050 = vxpose.xlu0.b32.start [1/16] %v974, 128
        %1051 = vxpose.xlu0.b32.cont [2/16] %v980, 128
        %1052 = vxpose.xlu0.b32.cont [3/16] %v986, 128
        %1053 = vxpose.xlu0.b32.cont [4/16] %v992, 128
        %1054 = vxpose.xlu0.b32.cont [5/16] 0.0, 128
        %1055 = vxpose.xlu0.b32.cont [6/16] 0.0, 128
        %1056 = vxpose.xlu0.b32.cont [7/16] 0.0, 128
        %1057 = vxpose.xlu0.b32.cont [8/16] 0.0, 128
        %1058 = vxpose.xlu0.b32.cont [9/16] 0.0, 128
        %1059 = vxpose.xlu0.b32.cont [10/16] 0.0, 128
        %1060 = vxpose.xlu0.b32.cont [11/16] 0.0, 128
        %1061 = vxpose.xlu0.b32.cont [12/16] 0.0, 128
        %1062 = vxpose.xlu0.b32.cont [13/16] 0.0, 128
        %1063 = vxpose.xlu0.b32.cont [14/16] 0.0, 128
        %1064 = vxpose.xlu0.b32.cont [15/16] 0.0, 128
        %1065 = vxpose.xlu0.b32.end [16/16] 0.0, 128
        %v1066 = vpop.trf.xlu0
        %v1067 = vpop.trf.xlu0
        %v1068 = vpop.trf.xlu0
        %v1069 = vpop.trf.xlu0
        %v1070 = vpop.trf.xlu0
        %v1071 = vpop.trf.xlu0
        %v1072 = vpop.trf.xlu0
        %v1073 = vpop.trf.xlu0
        %v1074 = vpop.trf.xlu0
        %v1075 = vpop.trf.xlu0
        %v1076 = vpop.trf.xlu0
        %v1077 = vpop.trf.xlu0
        %v1078 = vpop.trf.xlu0
        %v1079 = vpop.trf.xlu0
        %v1080 = vpop.trf.xlu0
        %v1081 = vpop.trf.xlu0
        %v1083 = vsel %vm490, %v1034, 0
        %v1086 = vsel %vm490, %v1035, 0
        %v1089 = vsel %vm490, %v1036, 0
        %v1092 = vsel %vm490, %v1037, 0
        %v1095 = vsel %vm490, %v1038, 0
        %v1098 = vsel %vm490, %v1039, 0
        %v1101 = vsel %vm490, %v1040, 0
        %v1104 = vsel %vm490, %v1041, 0
        %v1107 = vsel %vm490, %v1042, 0
        %v1110 = vsel %vm490, %v1043, 0
        %v1113 = vsel %vm490, %v1044, 0
        %v1116 = vsel %vm490, %v1045, 0
        %v1119 = vsel %vm490, %v1046, 0
        %v1122 = vsel %vm490, %v1047, 0
        %v1125 = vsel %vm490, %v1048, 0
        %v1128 = vsel %vm490, %v1049, 0
        %v1131 = vsel %vm490, %v1066, 0
        %v1134 = vsel %vm490, %v1067, 0
        %v1137 = vsel %vm490, %v1068, 0
        %v1140 = vsel %vm490, %v1069, 0
        %v1143 = vsel %vm490, %v1070, 0
        %v1146 = vsel %vm490, %v1071, 0
        %v1149 = vsel %vm490, %v1072, 0
        %v1152 = vsel %vm490, %v1073, 0
        %v1155 = vsel %vm490, %v1074, 0
        %v1158 = vsel %vm490, %v1075, 0
        %v1161 = vsel %vm490, %v1076, 0
        %v1164 = vsel %vm490, %v1077, 0
        %v1167 = vsel %vm490, %v1078, 0
        %v1170 = vsel %vm490, %v1079, 0
        %v1173 = vsel %vm490, %v1080, 0
        %v1176 = vsel %vm490, %v1081, 0
        %1178 = vmatprep.subr.mxu0 %v950
        %1179 = vmatpush1.msra.mxu0 %v948
        %1180 = vmatprep.subr.mxu0 %v956
        %1181 = vmatpush1.msra.mxu0 %v954
        %1182 = vmatprep.subr.mxu0 %v962
        %1183 = vmatpush1.msra.mxu0 %v960
        %1184 = vmatprep.subr.mxu0 %v968
        %1185 = vmatpush1.msra.mxu0 %v966
        %1186 = vmatprep.subr.mxu0 0.0
        %1187 = vmatpush1.msra.mxu0 0.0
        %1188 = vmatprep.subr.mxu0 0.0
        %1189 = vmatpush1.msra.mxu0 0.0
        %1190 = vmatprep.subr.mxu0 0.0
        %1191 = vmatpush1.msra.mxu0 0.0
        %1192 = vmatprep.subr.mxu0 0.0
        %1193 = vmatpush1.msra.mxu0 0.0
        %1194 = vmatprep.subr.mxu0 0.0
        %1195 = vmatpush1.msra.mxu0 0.0
        %1196 = vmatprep.subr.mxu0 0.0
        %1197 = vmatpush1.msra.mxu0 0.0
        %1198 = vmatprep.subr.mxu0 0.0
        %1199 = vmatpush1.msra.mxu0 0.0
        %1200 = vmatprep.subr.mxu0 0.0
        %1201 = vmatpush1.msra.mxu0 0.0
        %1202 = vmatprep.subr.mxu0 0.0
        %1203 = vmatpush1.msra.mxu0 0.0
        %1204 = vmatprep.subr.mxu0 0.0
        %1205 = vmatpush1.msra.mxu0 0.0
        %1206 = vmatprep.subr.mxu0 0.0
        %1207 = vmatpush1.msra.mxu0 0.0
        %1208 = vmatprep.subr.mxu0 0.0
        %1209 = vmatpush1.msra.mxu0 0.0
        %1210 = vmatprep.subr.mxu0 0.0
        %1211 = vmatpush1.msra.mxu0 0.0
        %1212 = vmatprep.subr.mxu0 0.0
        %1213 = vmatpush1.msra.mxu0 0.0
        %1214 = vmatprep.subr.mxu0 0.0
        %1215 = vmatpush1.msra.mxu0 0.0
        %1216 = vmatprep.subr.mxu0 0.0
        %1217 = vmatpush1.msra.mxu0 0.0
        %1218 = vmatprep.subr.mxu0 0.0
        %1219 = vmatpush1.msra.mxu0 0.0
        %1220 = vmatprep.subr.mxu0 0.0
        %1221 = vmatpush1.msra.mxu0 0.0
        %1222 = vmatprep.subr.mxu0 0.0
        %1223 = vmatpush1.msra.mxu0 0.0
        %1224 = vmatprep.subr.mxu0 0.0
        %1225 = vmatpush1.msra.mxu0 0.0
        %1226 = vmatprep.subr.mxu0 0.0
        %1227 = vmatpush1.msra.mxu0 0.0
        %1228 = vmatprep.subr.mxu0 0.0
        %1229 = vmatpush1.msra.mxu0 0.0
        %1230 = vmatprep.subr.mxu0 0.0
        %1231 = vmatpush1.msra.mxu0 0.0
        %1232 = vmatprep.subr.mxu0 0.0
        %1233 = vmatpush1.msra.mxu0 0.0
        %1234 = vmatprep.subr.mxu0 0.0
        %1235 = vmatpush1.msra.mxu0 0.0
        %1236 = vmatprep.subr.mxu0 0.0
        %1237 = vmatpush1.msra.mxu0 0.0
        %1238 = vmatprep.subr.mxu0 0.0
        %1239 = vmatpush1.msra.mxu0 0.0
        %1240 = vmatprep.subr.mxu0 0.0
        %1241 = vmatpush1.msra.mxu0 0.0
        %1242 = vmatprep.mubr.f32.mxu0 0.0
        %1243 = vmatmul.mubr.f32.gmra.mrb[0].mxu0 %v1083
        %v1244 = vpop.f32.mrb[0].mxu0
        %v1245 = vadd.f32 0.0, %v1244
        %v1246 = vpop.f32.mrb[0].mxu0
        %v1247 = vadd.f32 0.0, %v1246
        %1248 = vmatprep.mubr.f32.mxu0 0.0
        %1249 = vmatmul.mubr.f32.gmra.mrb[0].mxu0 %v1086
        %v1250 = vpop.f32.mrb[0].mxu0
        %v1251 = vadd.f32 0.0, %v1250
        %v1252 = vpop.f32.mrb[0].mxu0
        %v1253 = vadd.f32 0.0, %v1252
        %1254 = vmatprep.mubr.f32.mxu0 0.0
        %1255 = vmatmul.mubr.f32.gmra.mrb[0].mxu0 %v1089
        %v1256 = vpop.f32.mrb[0].mxu0
        %v1257 = vadd.f32 0.0, %v1256
        %v1258 = vpop.f32.mrb[0].mxu0
        %v1259 = vadd.f32 0.0, %v1258
        %1260 = vmatprep.mubr.f32.mxu0 0.0
        %1261 = vmatmul.mubr.f32.gmra.mrb[0].mxu0 %v1092
        %v1262 = vpop.f32.mrb[0].mxu0
        %v1263 = vadd.f32 0.0, %v1262
        %v1264 = vpop.f32.mrb[0].mxu0
        %v1265 = vadd.f32 0.0, %v1264
        %1266 = vmatprep.mubr.f32.mxu0 0.0
        %1267 = vmatmul.mubr.f32.gmra.mrb[0].mxu0 %v1095
        %v1268 = vpop.f32.mrb[0].mxu0
        %v1269 = vadd.f32 0.0, %v1268
        %v1270 = vpop.f32.mrb[0].mxu0
        %v1271 = vadd.f32 0.0, %v1270
        %1272 = vmatprep.mubr.f32.mxu0 0.0
        %1273 = vmatmul.mubr.f32.gmra.mrb[0].mxu0 %v1098
        %v1274 = vpop.f32.mrb[0].mxu0
        %v1275 = vadd.f32 0.0, %v1274
        %v1276 = vpop.f32.mrb[0].mxu0
        %v1277 = vadd.f32 0.0, %v1276
        %1278 = vmatprep.mubr.f32.mxu0 0.0
        %1279 = vmatmul.mubr.f32.gmra.mrb[0].mxu0 %v1101
        %v1280 = vpop.f32.mrb[0].mxu0
        %v1281 = vadd.f32 0.0, %v1280
        %v1282 = vpop.f32.mrb[0].mxu0
        %v1283 = vadd.f32 0.0, %v1282
        %1284 = vmatprep.mubr.f32.mxu0 0.0
        %1285 = vmatmul.mubr.f32.gmra.mrb[0].mxu0 %v1104
        %v1286 = vpop.f32.mrb[0].mxu0
        %v1287 = vadd.f32 0.0, %v1286
        %v1288 = vpop.f32.mrb[0].mxu0
        %v1289 = vadd.f32 0.0, %v1288
        %1290 = vmatprep.mubr.f32.mxu0 0.0
        %1291 = vmatmul.mubr.f32.gmra.mrb[0].mxu0 %v1107
        %v1292 = vpop.f32.mrb[0].mxu0
        %v1293 = vadd.f32 0.0, %v1292
        %v1294 = vpop.f32.mrb[0].mxu0
        %v1295 = vadd.f32 0.0, %v1294
        %1296 = vmatprep.mubr.f32.mxu0 0.0
        %1297 = vmatmul.mubr.f32.gmra.mrb[0].mxu0 %v1110
        %v1298 = vpop.f32.mrb[0].mxu0
        %v1299 = vadd.f32 0.0, %v1298
        %v1300 = vpop.f32.mrb[0].mxu0
        %v1301 = vadd.f32 0.0, %v1300
        %1302 = vmatprep.mubr.f32.mxu0 0.0
        %1303 = vmatmul.mubr.f32.gmra.mrb[0].mxu0 %v1113
        %v1304 = vpop.f32.mrb[0].mxu0
        %v1305 = vadd.f32 0.0, %v1304
        %v1306 = vpop.f32.mrb[0].mxu0
        %v1307 = vadd.f32 0.0, %v1306
        %1308 = vmatprep.mubr.f32.mxu0 0.0
        %1309 = vmatmul.mubr.f32.gmra.mrb[0].mxu0 %v1116
        %v1310 = vpop.f32.mrb[0].mxu0
        %v1311 = vadd.f32 0.0, %v1310
        %v1312 = vpop.f32.mrb[0].mxu0
        %v1313 = vadd.f32 0.0, %v1312
        %1314 = vmatprep.mubr.f32.mxu0 0.0
        %1315 = vmatmul.mubr.f32.gmra.mrb[0].mxu0 %v1119
        %v1316 = vpop.f32.mrb[0].mxu0
        %v1317 = vadd.f32 0.0, %v1316
        %v1318 = vpop.f32.mrb[0].mxu0
        %v1319 = vadd.f32 0.0, %v1318
        %1320 = vmatprep.mubr.f32.mxu0 0.0
        %1321 = vmatmul.mubr.f32.gmra.mrb[0].mxu0 %v1122
        %v1322 = vpop.f32.mrb[0].mxu0
        %v1323 = vadd.f32 0.0, %v1322
        %v1324 = vpop.f32.mrb[0].mxu0
        %v1325 = vadd.f32 0.0, %v1324
        %1326 = vmatprep.mubr.f32.mxu0 0.0
        %1327 = vmatmul.mubr.f32.gmra.mrb[0].mxu0 %v1125
        %v1328 = vpop.f32.mrb[0].mxu0
        %v1329 = vadd.f32 0.0, %v1328
        %v1330 = vpop.f32.mrb[0].mxu0
        %v1331 = vadd.f32 0.0, %v1330
        %1332 = vmatprep.mubr.f32.mxu0 0.0
        %1333 = vmatmul.mubr.f32.gmra.mrb[0].mxu0 %v1128
        %v1334 = vpop.f32.mrb[0].mxu0
        %v1335 = vadd.f32 0.0, %v1334
        %v1336 = vpop.f32.mrb[0].mxu0
        %v1337 = vadd.f32 0.0, %v1336
        %1338 = vmatprep.mubr.f32.mxu0 0.0
        %1339 = vmatmul.mubr.f32.gmra.mrb[0].mxu0 %v1131
        %v1340 = vpop.f32.mrb[0].mxu0
        %v1341 = vadd.f32 0.0, %v1340
        %v1342 = vpop.f32.mrb[0].mxu0
        %v1343 = vadd.f32 0.0, %v1342
        %1344 = vmatprep.mubr.f32.mxu0 0.0
        %1345 = vmatmul.mubr.f32.gmra.mrb[0].mxu0 %v1134
        %v1346 = vpop.f32.mrb[0].mxu0
        %v1347 = vadd.f32 0.0, %v1346
        %v1348 = vpop.f32.mrb[0].mxu0
        %v1349 = vadd.f32 0.0, %v1348
        %1350 = vmatprep.mubr.f32.mxu0 0.0
        %1351 = vmatmul.mubr.f32.gmra.mrb[0].mxu0 %v1137
        %v1352 = vpop.f32.mrb[0].mxu0
        %v1353 = vadd.f32 0.0, %v1352
        %v1354 = vpop.f32.mrb[0].mxu0
        %v1355 = vadd.f32 0.0, %v1354
        %1356 = vmatprep.mubr.f32.mxu0 0.0
        %1357 = vmatmul.mubr.f32.gmra.mrb[0].mxu0 %v1140
        %v1358 = vpop.f32.mrb[0].mxu0
        %v1359 = vadd.f32 0.0, %v1358
        %v1360 = vpop.f32.mrb[0].mxu0
        %v1361 = vadd.f32 0.0, %v1360
        %1362 = vmatprep.mubr.f32.mxu0 0.0
        %1363 = vmatmul.mubr.f32.gmra.mrb[0].mxu0 %v1143
        %v1364 = vpop.f32.mrb[0].mxu0
        %v1365 = vadd.f32 0.0, %v1364
        %v1366 = vpop.f32.mrb[0].mxu0
        %v1367 = vadd.f32 0.0, %v1366
        %1368 = vmatprep.mubr.f32.mxu0 0.0
        %1369 = vmatmul.mubr.f32.gmra.mrb[0].mxu0 %v1146
        %v1370 = vpop.f32.mrb[0].mxu0
        %v1371 = vadd.f32 0.0, %v1370
        %v1372 = vpop.f32.mrb[0].mxu0
        %v1373 = vadd.f32 0.0, %v1372
        %1374 = vmatprep.mubr.f32.mxu0 0.0
        %1375 = vmatmul.mubr.f32.gmra.mrb[0].mxu0 %v1149
        %v1376 = vpop.f32.mrb[0].mxu0
        %v1377 = vadd.f32 0.0, %v1376
        %v1378 = vpop.f32.mrb[0].mxu0
        %v1379 = vadd.f32 0.0, %v1378
        %1380 = vmatprep.mubr.f32.mxu0 0.0
        %1381 = vmatmul.mubr.f32.gmra.mrb[0].mxu0 %v1152
        %v1382 = vpop.f32.mrb[0].mxu0
        %v1383 = vadd.f32 0.0, %v1382
        %v1384 = vpop.f32.mrb[0].mxu0
        %v1385 = vadd.f32 0.0, %v1384
        %1386 = vmatprep.mubr.f32.mxu0 0.0
        %1387 = vmatmul.mubr.f32.gmra.mrb[0].mxu0 %v1155
        %v1388 = vpop.f32.mrb[0].mxu0
        %v1389 = vadd.f32 0.0, %v1388
        %v1390 = vpop.f32.mrb[0].mxu0
        %v1391 = vadd.f32 0.0, %v1390
        %1392 = vmatprep.mubr.f32.mxu0 0.0
        %1393 = vmatmul.mubr.f32.gmra.mrb[0].mxu0 %v1158
        %v1394 = vpop.f32.mrb[0].mxu0
        %v1395 = vadd.f32 0.0, %v1394
        %v1396 = vpop.f32.mrb[0].mxu0
        %v1397 = vadd.f32 0.0, %v1396
        %1398 = vmatprep.mubr.f32.mxu0 0.0
        %1399 = vmatmul.mubr.f32.gmra.mrb[0].mxu0 %v1161
        %v1400 = vpop.f32.mrb[0].mxu0
        %v1401 = vadd.f32 0.0, %v1400
        %v1402 = vpop.f32.mrb[0].mxu0
        %v1403 = vadd.f32 0.0, %v1402
        %1404 = vmatprep.mubr.f32.mxu0 0.0
        %1405 = vmatmul.mubr.f32.gmra.mrb[0].mxu0 %v1164
        %v1406 = vpop.f32.mrb[0].mxu0
        %v1407 = vadd.f32 0.0, %v1406
        %v1408 = vpop.f32.mrb[0].mxu0
        %v1409 = vadd.f32 0.0, %v1408
        %1410 = vmatprep.mubr.f32.mxu0 0.0
        %1411 = vmatmul.mubr.f32.gmra.mrb[0].mxu0 %v1167
        %v1412 = vpop.f32.mrb[0].mxu0
        %v1413 = vadd.f32 0.0, %v1412
        %v1414 = vpop.f32.mrb[0].mxu0
        %v1415 = vadd.f32 0.0, %v1414
        %1416 = vmatprep.mubr.f32.mxu0 0.0
        %1417 = vmatmul.mubr.f32.gmra.mrb[0].mxu0 %v1170
        %v1418 = vpop.f32.mrb[0].mxu0
        %v1419 = vadd.f32 0.0, %v1418
        %v1420 = vpop.f32.mrb[0].mxu0
        %v1421 = vadd.f32 0.0, %v1420
        %1422 = vmatprep.mubr.f32.mxu0 0.0
        %1423 = vmatmul.mubr.f32.gmra.mrb[0].mxu0 %v1173
        %v1424 = vpop.f32.mrb[0].mxu0
        %v1425 = vadd.f32 0.0, %v1424
        %v1426 = vpop.f32.mrb[0].mxu0
        %v1427 = vadd.f32 0.0, %v1426
        %1428 = vmatprep.mubr.f32.mxu0 0.0
        %1429 = vmatmul.mubr.f32.gmra.mrb[0].mxu0 %v1176
        %v1430 = vpop.f32.mrb[0].mxu0
        %v1431 = vadd.f32 0.0, %v1430
        %v1432 = vpop.f32.mrb[0].mxu0
        %v1433 = vadd.f32 0.0, %v1432
        %1434 = vdwg.mxu0
        %v1435 = vmax.f32 %v1245, %v1257
        %v1436 = vmax.f32 %v1251, %v1263
        %v1437 = vmax.f32 %v1435, %v1269
        %v1438 = vmax.f32 %v1436, %v1275
        %v1439 = vmax.f32 %v1437, %v1281
        %v1440 = vmax.f32 %v1438, %v1287
        %v1441 = vmax.f32 %v1439, %v1293
        %v1442 = vmax.f32 %v1440, %v1299
        %v1443 = vmax.f32 %v1441, %v1305
        %v1444 = vmax.f32 %v1442, %v1311
        %v1445 = vmax.f32 %v1443, %v1317
        %v1446 = vmax.f32 %v1444, %v1323
        %v1447 = vmax.f32 %v1445, %v1329
        %v1448 = vmax.f32 %v1446, %v1335
        %v1449 = vmax.f32 %v1447, %v1341
        %v1450 = vmax.f32 %v1448, %v1347
        %v1451 = vmax.f32 %v1449, %v1353
        %v1452 = vmax.f32 %v1450, %v1359
        %v1453 = vmax.f32 %v1451, %v1365
        %v1454 = vmax.f32 %v1452, %v1371
        %v1455 = vmax.f32 %v1453, %v1377
        %v1456 = vmax.f32 %v1454, %v1383
        %v1457 = vmax.f32 %v1455, %v1389
        %v1458 = vmax.f32 %v1456, %v1395
        %v1459 = vmax.f32 %v1457, %v1401
        %v1460 = vmax.f32 %v1458, %v1407
        %v1461 = vmax.f32 %v1459, %v1413
        %v1462 = vmax.f32 %v1460, %v1419
        %v1463 = vmax.f32 %v1461, %v1425
        %v1464 = vmax.f32 %v1462, %v1431
        %v1465 = vmax.f32 %v1463, %v1464
        %v1466 = vrot.slane %v1465, 4
        %v1467 = vmax.f32 %v1465, %v1466
        %v1468 = vrot.slane %v1467, 2
        %v1469 = vmax.f32 %v1467, %v1468
        %v1470 = vrot.slane %v1469, 1
        %v1471 = vmax.f32 %v1469, %v1470
        %v1472 = vmax.f32 %v1247, %v1259
        %v1473 = vmax.f32 %v1253, %v1265
        %v1474 = vmax.f32 %v1472, %v1271
        %v1475 = vmax.f32 %v1473, %v1277
        %v1476 = vmax.f32 %v1474, %v1283
        %v1477 = vmax.f32 %v1475, %v1289
        %v1478 = vmax.f32 %v1476, %v1295
        %v1479 = vmax.f32 %v1477, %v1301
        %v1480 = vmax.f32 %v1478, %v1307
        %v1481 = vmax.f32 %v1479, %v1313
        %v1482 = vmax.f32 %v1480, %v1319
        %v1483 = vmax.f32 %v1481, %v1325
        %v1484 = vmax.f32 %v1482, %v1331
        %v1485 = vmax.f32 %v1483, %v1337
        %v1486 = vmax.f32 %v1484, %v1343
        %v1487 = vmax.f32 %v1485, %v1349
        %v1488 = vmax.f32 %v1486, %v1355
        %v1489 = vmax.f32 %v1487, %v1361
        %v1490 = vmax.f32 %v1488, %v1367
        %v1491 = vmax.f32 %v1489, %v1373
        %v1492 = vmax.f32 %v1490, %v1379
        %v1493 = vmax.f32 %v1491, %v1385
        %v1494 = vmax.f32 %v1492, %v1391
        %v1495 = vmax.f32 %v1493, %v1397
        %v1496 = vmax.f32 %v1494, %v1403
        %v1497 = vmax.f32 %v1495, %v1409
        %v1498 = vmax.f32 %v1496, %v1415
        %v1499 = vmax.f32 %v1497, %v1421
        %v1500 = vmax.f32 %v1498, %v1427
        %v1501 = vmax.f32 %v1499, %v1433
        %v1502 = vmax.f32 %v1500, %v1501
        %v1503 = vrot.slane %v1502, 4
        %v1504 = vmax.f32 %v1502, %v1503
        %v1505 = vrot.slane %v1504, 2
        %v1506 = vmax.f32 %v1504, %v1505
        %v1507 = vrot.slane %v1506, 1
        %v1508 = vmax.f32 %v1506, %v1507
        %v1509 = vsub.f32 %v1245, %v1471
        %v1510 = vsub.f32 %v1247, %v1508
        %v1511 = vsub.f32 %v1251, %v1471
        %v1512 = vsub.f32 %v1253, %v1508
        %v1513 = vsub.f32 %v1257, %v1471
        %v1514 = vsub.f32 %v1259, %v1508
        %v1515 = vsub.f32 %v1263, %v1471
        %v1516 = vsub.f32 %v1265, %v1508
        %v1517 = vsub.f32 %v1269, %v1471
        %v1518 = vsub.f32 %v1271, %v1508
        %v1519 = vsub.f32 %v1275, %v1471
        %v1520 = vsub.f32 %v1277, %v1508
        %v1521 = vsub.f32 %v1281, %v1471
        %v1522 = vsub.f32 %v1283, %v1508
        %v1523 = vsub.f32 %v1287, %v1471
        %v1524 = vsub.f32 %v1289, %v1508
        %v1525 = vsub.f32 %v1293, %v1471
        %v1526 = vsub.f32 %v1295, %v1508
        %v1527 = vsub.f32 %v1299, %v1471
        %v1528 = vsub.f32 %v1301, %v1508
        %v1529 = vsub.f32 %v1305, %v1471
        %v1530 = vsub.f32 %v1307, %v1508
        %v1531 = vsub.f32 %v1311, %v1471
        %v1532 = vsub.f32 %v1313, %v1508
        %v1533 = vsub.f32 %v1317, %v1471
        %v1534 = vsub.f32 %v1319, %v1508
        %v1535 = vsub.f32 %v1323, %v1471
        %v1536 = vsub.f32 %v1325, %v1508
        %v1537 = vsub.f32 %v1329, %v1471
        %v1538 = vsub.f32 %v1331, %v1508
        %v1539 = vsub.f32 %v1335, %v1471
        %v1540 = vsub.f32 %v1337, %v1508
        %v1541 = vsub.f32 %v1341, %v1471
        %v1542 = vsub.f32 %v1343, %v1508
        %v1543 = vsub.f32 %v1347, %v1471
        %v1544 = vsub.f32 %v1349, %v1508
        %v1545 = vsub.f32 %v1353, %v1471
        %v1546 = vsub.f32 %v1355, %v1508
        %v1547 = vsub.f32 %v1359, %v1471
        %v1548 = vsub.f32 %v1361, %v1508
        %v1549 = vsub.f32 %v1365, %v1471
        %v1550 = vsub.f32 %v1367, %v1508
        %v1551 = vsub.f32 %v1371, %v1471
        %v1552 = vsub.f32 %v1373, %v1508
        %v1553 = vsub.f32 %v1377, %v1471
        %v1554 = vsub.f32 %v1379, %v1508
        %v1555 = vsub.f32 %v1383, %v1471
        %v1556 = vsub.f32 %v1385, %v1508
        %v1557 = vsub.f32 %v1389, %v1471
        %v1558 = vsub.f32 %v1391, %v1508
        %v1559 = vsub.f32 %v1395, %v1471
        %v1560 = vsub.f32 %v1397, %v1508
        %v1561 = vsub.f32 %v1401, %v1471
        %v1562 = vsub.f32 %v1403, %v1508
        %v1563 = vsub.f32 %v1407, %v1471
        %v1564 = vsub.f32 %v1409, %v1508
        %v1565 = vsub.f32 %v1413, %v1471
        %v1566 = vsub.f32 %v1415, %v1508
        %v1567 = vsub.f32 %v1419, %v1471
        %v1568 = vsub.f32 %v1421, %v1508
        %v1569 = vsub.f32 %v1425, %v1471
        %v1570 = vsub.f32 %v1427, %v1508
        %v1571 = vsub.f32 %v1431, %v1471
        %v1572 = vsub.f32 %v1433, %v1508
        %v1573 = vmul.f32 %v1509, 1.442695
        %v1574 = vpow.pop %v1573
        %v1575 = vmul.f32 %v1510, 1.442695
        %v1576 = vpow.pop %v1575
        %v1577 = vmul.f32 %v1511, 1.442695
        %v1578 = vpow.pop %v1577
        %v1579 = vmul.f32 %v1512, 1.442695
        %v1580 = vpow.pop %v1579
        %v1581 = vmul.f32 %v1513, 1.442695
        %v1582 = vpow.pop %v1581
        %v1583 = vmul.f32 %v1514, 1.442695
        %v1584 = vpow.pop %v1583
        %v1585 = vmul.f32 %v1515, 1.442695
        %v1586 = vpow.pop %v1585
        %v1587 = vmul.f32 %v1516, 1.442695
        %v1588 = vpow.pop %v1587
        %v1589 = vmul.f32 %v1517, 1.442695
        %v1590 = vpow.pop %v1589
        %v1591 = vmul.f32 %v1518, 1.442695
        %v1592 = vpow.pop %v1591
        %v1593 = vmul.f32 %v1519, 1.442695
        %v1594 = vpow.pop %v1593
        %v1595 = vmul.f32 %v1520, 1.442695
        %v1596 = vpow.pop %v1595
        %v1597 = vmul.f32 %v1521, 1.442695
        %v1598 = vpow.pop %v1597
        %v1599 = vmul.f32 %v1522, 1.442695
        %v1600 = vpow.pop %v1599
        %v1601 = vmul.f32 %v1523, 1.442695
        %v1602 = vpow.pop %v1601
        %v1603 = vmul.f32 %v1524, 1.442695
        %v1604 = vpow.pop %v1603
        %v1605 = vmul.f32 %v1525, 1.442695
        %v1606 = vpow.pop %v1605
        %v1607 = vmul.f32 %v1526, 1.442695
        %v1608 = vpow.pop %v1607
        %v1609 = vmul.f32 %v1527, 1.442695
        %v1610 = vpow.pop %v1609
        %v1611 = vmul.f32 %v1528, 1.442695
        %v1612 = vpow.pop %v1611
        %v1613 = vmul.f32 %v1529, 1.442695
        %v1614 = vpow.pop %v1613
        %v1615 = vmul.f32 %v1530, 1.442695
        %v1616 = vpow.pop %v1615
        %v1617 = vmul.f32 %v1531, 1.442695
        %v1618 = vpow.pop %v1617
        %v1619 = vmul.f32 %v1532, 1.442695
        %v1620 = vpow.pop %v1619
        %v1621 = vmul.f32 %v1533, 1.442695
        %v1622 = vpow.pop %v1621
        %v1623 = vmul.f32 %v1534, 1.442695
        %v1624 = vpow.pop %v1623
        %v1625 = vmul.f32 %v1535, 1.442695
        %v1626 = vpow.pop %v1625
        %v1627 = vmul.f32 %v1536, 1.442695
        %v1628 = vpow.pop %v1627
        %v1629 = vmul.f32 %v1537, 1.442695
        %v1630 = vpow.pop %v1629
        %v1631 = vmul.f32 %v1538, 1.442695
        %v1632 = vpow.pop %v1631
        %v1633 = vmul.f32 %v1539, 1.442695
        %v1634 = vpow.pop %v1633
        %v1635 = vmul.f32 %v1540, 1.442695
        %v1636 = vpow.pop %v1635
        %v1637 = vmul.f32 %v1541, 1.442695
        %v1638 = vpow.pop %v1637
        %v1639 = vmul.f32 %v1542, 1.442695
        %v1640 = vpow.pop %v1639
        %v1641 = vmul.f32 %v1543, 1.442695
        %v1642 = vpow.pop %v1641
        %v1643 = vmul.f32 %v1544, 1.442695
        %v1644 = vpow.pop %v1643
        %v1645 = vmul.f32 %v1545, 1.442695
        %v1646 = vpow.pop %v1645
        %v1647 = vmul.f32 %v1546, 1.442695
        %v1648 = vpow.pop %v1647
        %v1649 = vmul.f32 %v1547, 1.442695
        %v1650 = vpow.pop %v1649
        %v1651 = vmul.f32 %v1548, 1.442695
        %v1652 = vpow.pop %v1651
        %v1653 = vmul.f32 %v1549, 1.442695
        %v1654 = vpow.pop %v1653
        %v1655 = vmul.f32 %v1550, 1.442695
        %v1656 = vpow.pop %v1655
        %v1657 = vmul.f32 %v1551, 1.442695
        %v1658 = vpow.pop %v1657
        %v1659 = vmul.f32 %v1552, 1.442695
        %v1660 = vpow.pop %v1659
        %v1661 = vmul.f32 %v1553, 1.442695
        %v1662 = vpow.pop %v1661
        %v1663 = vmul.f32 %v1554, 1.442695
        %v1664 = vpow.pop %v1663
        %v1665 = vmul.f32 %v1555, 1.442695
        %v1666 = vpow.pop %v1665
        %v1667 = vmul.f32 %v1556, 1.442695
        %v1668 = vpow.pop %v1667
        %v1669 = vmul.f32 %v1557, 1.442695
        %v1670 = vpow.pop %v1669
        %v1671 = vmul.f32 %v1558, 1.442695
        %v1672 = vpow.pop %v1671
        %v1673 = vmul.f32 %v1559, 1.442695
        %v1674 = vpow.pop %v1673
        %v1675 = vmul.f32 %v1560, 1.442695
        %v1676 = vpow.pop %v1675
        %v1677 = vmul.f32 %v1561, 1.442695
        %v1678 = vpow.pop %v1677
        %v1679 = vmul.f32 %v1562, 1.442695
        %v1680 = vpow.pop %v1679
        %v1681 = vmul.f32 %v1563, 1.442695
        %v1682 = vpow.pop %v1681
        %v1683 = vmul.f32 %v1564, 1.442695
        %v1684 = vpow.pop %v1683
        %v1685 = vmul.f32 %v1565, 1.442695
        %v1686 = vpow.pop %v1685
        %v1687 = vmul.f32 %v1566, 1.442695
        %v1688 = vpow.pop %v1687
        %v1689 = vmul.f32 %v1567, 1.442695
        %v1690 = vpow.pop %v1689
        %v1691 = vmul.f32 %v1568, 1.442695
        %v1692 = vpow.pop %v1691
        %v1693 = vmul.f32 %v1569, 1.442695
        %v1694 = vpow.pop %v1693
        %v1695 = vmul.f32 %v1570, 1.442695
        %v1696 = vpow.pop %v1695
        %v1697 = vmul.f32 %v1571, 1.442695
        %v1698 = vpow.pop %v1697
        %v1699 = vmul.f32 %v1572, 1.442695
        %v1700 = vpow.pop %v1699
        %v1701 = vadd.f32 %v1574, %v1578
        %v1702 = vadd.f32 %v1701, %v1582
        %v1703 = vadd.f32 %v1702, %v1586
        %v1704 = vadd.f32 %v1703, %v1590
        %v1705 = vadd.f32 %v1704, %v1594
        %v1706 = vadd.f32 %v1705, %v1598
        %v1707 = vadd.f32 %v1706, %v1602
        %v1708 = vadd.f32 %v1707, %v1606
        %v1709 = vadd.f32 %v1708, %v1610
        %v1710 = vadd.f32 %v1709, %v1614
        %v1711 = vadd.f32 %v1710, %v1618
        %v1712 = vadd.f32 %v1711, %v1622
        %v1713 = vadd.f32 %v1712, %v1626
        %v1714 = vadd.f32 %v1713, %v1630
        %v1715 = vadd.f32 %v1714, %v1634
        %v1716 = vadd.f32 %v1715, %v1638
        %v1717 = vadd.f32 %v1716, %v1642
        %v1718 = vadd.f32 %v1717, %v1646
        %v1719 = vadd.f32 %v1718, %v1650
        %v1720 = vadd.f32 %v1719, %v1654
        %v1721 = vadd.f32 %v1720, %v1658
        %v1722 = vadd.f32 %v1721, %v1662
        %v1723 = vadd.f32 %v1722, %v1666
        %v1724 = vadd.f32 %v1723, %v1670
        %v1725 = vadd.f32 %v1724, %v1674
        %v1726 = vadd.f32 %v1725, %v1678
        %v1727 = vadd.f32 %v1726, %v1682
        %v1728 = vadd.f32 %v1727, %v1686
        %v1729 = vadd.f32 %v1728, %v1690
        %v1730 = vadd.f32 %v1729, %v1694
        %v1731 = vadd.f32 %v1730, %v1698
        %v1732 = vrot.slane %v1731, 4
        %v1733 = vadd.f32 %v1731, %v1732
        %v1734 = vrot.slane %v1733, 2
        %v1735 = vadd.f32 %v1733, %v1734
        %v1736 = vrot.slane %v1735, 1
        %v1737 = vadd.f32 %v1735, %v1736
        %v1738 = vadd.f32 %v1576, %v1580
        %v1739 = vadd.f32 %v1738, %v1584
        %v1740 = vadd.f32 %v1739, %v1588
        %v1741 = vadd.f32 %v1740, %v1592
        %v1742 = vadd.f32 %v1741, %v1596
        %v1743 = vadd.f32 %v1742, %v1600
        %v1744 = vadd.f32 %v1743, %v1604
        %v1745 = vadd.f32 %v1744, %v1608
        %v1746 = vadd.f32 %v1745, %v1612
        %v1747 = vadd.f32 %v1746, %v1616
        %v1748 = vadd.f32 %v1747, %v1620
        %v1749 = vadd.f32 %v1748, %v1624
        %v1750 = vadd.f32 %v1749, %v1628
        %v1751 = vadd.f32 %v1750, %v1632
        %v1752 = vadd.f32 %v1751, %v1636
        %v1753 = vadd.f32 %v1752, %v1640
        %v1754 = vadd.f32 %v1753, %v1644
        %v1755 = vadd.f32 %v1754, %v1648
        %v1756 = vadd.f32 %v1755, %v1652
        %v1757 = vadd.f32 %v1756, %v1656
        %v1758 = vadd.f32 %v1757, %v1660
        %v1759 = vadd.f32 %v1758, %v1664
        %v1760 = vadd.f32 %v1759, %v1668
        %v1761 = vadd.f32 %v1760, %v1672
        %v1762 = vadd.f32 %v1761, %v1676
        %v1763 = vadd.f32 %v1762, %v1680
        %v1764 = vadd.f32 %v1763, %v1684
        %v1765 = vadd.f32 %v1764, %v1688
        %v1766 = vadd.f32 %v1765, %v1692
        %v1767 = vadd.f32 %v1766, %v1696
        %v1768 = vadd.f32 %v1767, %v1700
        %v1769 = vrot.slane %v1768, 4
        %v1770 = vadd.f32 %v1768, %v1769
        %v1771 = vrot.slane %v1770, 2
        %v1772 = vadd.f32 %v1770, %v1771
        %v1773 = vrot.slane %v1772, 1
        %v1774 = vadd.f32 %v1772, %v1773
        %1775 = vmatprep.subr.mxu0 %v1576
        %1776 = vmatpush1.msra.mxu0 %v1574
        %1777 = vmatprep.subr.mxu0 %v1580
        %1778 = vmatpush1.msra.mxu0 %v1578
        %1779 = vmatprep.subr.mxu0 %v1584
        %1780 = vmatpush1.msra.mxu0 %v1582
        %1781 = vmatprep.subr.mxu0 %v1588
        %1782 = vmatpush1.msra.mxu0 %v1586
        %1783 = vmatprep.subr.mxu0 %v1592
        %1784 = vmatpush1.msra.mxu0 %v1590
        %1785 = vmatprep.subr.mxu0 %v1596
        %1786 = vmatpush1.msra.mxu0 %v1594
        %1787 = vmatprep.subr.mxu0 %v1600
        %1788 = vmatpush1.msra.mxu0 %v1598
        %1789 = vmatprep.subr.mxu0 %v1604
        %1790 = vmatpush1.msra.mxu0 %v1602
        %1791 = vmatprep.subr.mxu0 %v1608
        %1792 = vmatpush1.msra.mxu0 %v1606
        %1793 = vmatprep.subr.mxu0 %v1612
        %1794 = vmatpush1.msra.mxu0 %v1610
        %1795 = vmatprep.subr.mxu0 %v1616
        %1796 = vmatpush1.msra.mxu0 %v1614
        %1797 = vmatprep.subr.mxu0 %v1620
        %1798 = vmatpush1.msra.mxu0 %v1618
        %1799 = vmatprep.subr.mxu0 %v1624
        %1800 = vmatpush1.msra.mxu0 %v1622
        %1801 = vmatprep.subr.mxu0 %v1628
        %1802 = vmatpush1.msra.mxu0 %v1626
        %1803 = vmatprep.subr.mxu0 %v1632
        %1804 = vmatpush1.msra.mxu0 %v1630
        %1805 = vmatprep.subr.mxu0 %v1636
        %1806 = vmatpush1.msra.mxu0 %v1634
        %1807 = vmatprep.subr.mxu0 %v1640
        %1808 = vmatpush1.msra.mxu0 %v1638
        %1809 = vmatprep.subr.mxu0 %v1644
        %1810 = vmatpush1.msra.mxu0 %v1642
        %1811 = vmatprep.subr.mxu0 %v1648
        %1812 = vmatpush1.msra.mxu0 %v1646
        %1813 = vmatprep.subr.mxu0 %v1652
        %1814 = vmatpush1.msra.mxu0 %v1650
        %1815 = vmatprep.subr.mxu0 %v1656
        %1816 = vmatpush1.msra.mxu0 %v1654
        %1817 = vmatprep.subr.mxu0 %v1660
        %1818 = vmatpush1.msra.mxu0 %v1658
        %1819 = vmatprep.subr.mxu0 %v1664
        %1820 = vmatpush1.msra.mxu0 %v1662
        %1821 = vmatprep.subr.mxu0 %v1668
        %1822 = vmatpush1.msra.mxu0 %v1666
        %1823 = vmatprep.subr.mxu0 %v1672
        %1824 = vmatpush1.msra.mxu0 %v1670
        %1825 = vmatprep.subr.mxu0 %v1676
        %1826 = vmatpush1.msra.mxu0 %v1674
        %1827 = vmatprep.subr.mxu0 %v1680
        %1828 = vmatpush1.msra.mxu0 %v1678
        %1829 = vmatprep.subr.mxu0 %v1684
        %1830 = vmatpush1.msra.mxu0 %v1682
        %1831 = vmatprep.subr.mxu0 %v1688
        %1832 = vmatpush1.msra.mxu0 %v1686
        %1833 = vmatprep.subr.mxu0 %v1692
        %1834 = vmatpush1.msra.mxu0 %v1690
        %1835 = vmatprep.subr.mxu0 %v1696
        %1836 = vmatpush1.msra.mxu0 %v1694
        %1837 = vmatprep.subr.mxu0 %v1700
        %1838 = vmatpush1.msra.mxu0 %v1698
        %1839 = vmatprep.mubr.f32.mxu0 %v998
        %1840 = vmatmul.mubr.f32.gmra.mrb[0].mxu0 %v996
        %v1841 = vpop.f32.mrb[0].mxu0
        %v1842 = vadd.f32 0.0, %v1841
        %v1843 = vpop.f32.mrb[0].mxu0
        %v1844 = vadd.f32 0.0, %v1843
        %1845 = vmatprep.mubr.f32.mxu0 %v1004
        %1846 = vmatmul.mubr.f32.gmra.mrb[0].mxu0 %v1002
        %v1847 = vpop.f32.mrb[0].mxu0
        %v1848 = vadd.f32 0.0, %v1847
        %v1849 = vpop.f32.mrb[0].mxu0
        %v1850 = vadd.f32 0.0, %v1849
        %1851 = vmatprep.mubr.f32.mxu0 %v1010
        %1852 = vmatmul.mubr.f32.gmra.mrb[0].mxu0 %v1008
        %v1853 = vpop.f32.mrb[0].mxu0
        %v1854 = vadd.f32 0.0, %v1853
        %v1855 = vpop.f32.mrb[0].mxu0
        %v1856 = vadd.f32 0.0, %v1855
        %1857 = vmatprep.mubr.f32.mxu0 %v1016
        %1858 = vmatmul.mubr.f32.gmra.mrb[0].mxu0 %v1014
        %v1859 = vpop.f32.mrb[0].mxu0
        %v1860 = vadd.f32 0.0, %v1859
        %v1861 = vpop.f32.mrb[0].mxu0
        %v1862 = vadd.f32 0.0, %v1861
        %1863 = vdwg.mxu0
        %v1864 = vrcp.pop %v1737
        %v1865 = vmul.f32 1.0, %v1864
        %v1866 = vrcp.pop %v1774
        %v1867 = vmul.f32 1.0, %v1866
        %v1868 = vmul.f32 %v1842, %v1865
        %v1869 = vmul.f32 %v1844, %v1867
        %v1870 = vmul.f32 %v1848, %v1865
        %v1871 = vmul.f32 %v1850, %v1867
        %v1872 = vmul.f32 %v1854, %v1865
        %v1873 = vmul.f32 %v1856, %v1867
        %v1874 = vmul.f32 %v1860, %v1865
        %v1875 = vmul.f32 %v1862, %v1867
        %1877 = vset.pattern.permute.xlu0 0
        %1878 = vperm.xlu0 %1877, %v466
        %v1879 = vpop.permute.xlu0 %1878
        %1882 = vset.pattern.permute.xlu0 0
        %1883 = vperm.xlu0 %1882, %v467
        %v1884 = vpop.permute.xlu0 %1883
        %1887 = vset.pattern.permute.xlu0 0
        %1888 = vperm.xlu0 %1887, %v468
        %v1889 = vpop.permute.xlu0 %1888
        %1892 = vset.pattern.permute.xlu0 0
        %1893 = vperm.xlu0 %1892, %v469
        %v1894 = vpop.permute.xlu0 %1893
        %v1897 = vsel %vm490, %v462, 0
        %v1900 = vsel %vm490, %v463, 0
        %v1903 = vsel %vm490, %v464, 0
        %v1906 = vsel %vm490, %v465, 0
        %1908 = vmatprep.subr.mxu0 %v1869
        %1909 = vmatpush1.msra.mxu0 %v1868
        %1910 = vmatprep.subr.mxu0 %v1871
        %1911 = vmatpush1.msra.mxu0 %v1870
        %1912 = vmatprep.subr.mxu0 %v1873
        %1913 = vmatpush1.msra.mxu0 %v1872
        %1914 = vmatprep.subr.mxu0 %v1875
        %1915 = vmatpush1.msra.mxu0 %v1874
        %1916 = vmatprep.subr.mxu0 0.0
        %1917 = vmatpush1.msra.mxu0 0.0
        %1918 = vmatprep.subr.mxu0 0.0
        %1919 = vmatpush1.msra.mxu0 0.0
        %1920 = vmatprep.subr.mxu0 0.0
        %1921 = vmatpush1.msra.mxu0 0.0
        %1922 = vmatprep.subr.mxu0 0.0
        %1923 = vmatpush1.msra.mxu0 0.0
        %1924 = vmatprep.subr.mxu0 0.0
        %1925 = vmatpush1.msra.mxu0 0.0
        %1926 = vmatprep.subr.mxu0 0.0
        %1927 = vmatpush1.msra.mxu0 0.0
        %1928 = vmatprep.subr.mxu0 0.0
        %1929 = vmatpush1.msra.mxu0 0.0
        %1930 = vmatprep.subr.mxu0 0.0
        %1931 = vmatpush1.msra.mxu0 0.0
        %1932 = vmatprep.subr.mxu0 0.0
        %1933 = vmatpush1.msra.mxu0 0.0
        %1934 = vmatprep.subr.mxu0 0.0
        %1935 = vmatpush1.msra.mxu0 0.0
        %1936 = vmatprep.subr.mxu0 0.0
        %1937 = vmatpush1.msra.mxu0 0.0
        %1938 = vmatprep.subr.mxu0 0.0
        %1939 = vmatpush1.msra.mxu0 0.0
        %1940 = vmatprep.subr.mxu0 0.0
        %1941 = vmatpush1.msra.mxu0 0.0
        %1942 = vmatprep.subr.mxu0 0.0
        %1943 = vmatpush1.msra.mxu0 0.0
        %1944 = vmatprep.subr.mxu0 0.0
        %1945 = vmatpush1.msra.mxu0 0.0
        %1946 = vmatprep.subr.mxu0 0.0
        %1947 = vmatpush1.msra.mxu0 0.0
        %1948 = vmatprep.subr.mxu0 0.0
        %1949 = vmatpush1.msra.mxu0 0.0
        %1950 = vmatprep.subr.mxu0 0.0
        %1951 = vmatpush1.msra.mxu0 0.0
        %1952 = vmatprep.subr.mxu0 0.0
        %1953 = vmatpush1.msra.mxu0 0.0
        %1954 = vmatprep.subr.mxu0 0.0
        %1955 = vmatpush1.msra.mxu0 0.0
        %1956 = vmatprep.subr.mxu0 0.0
        %1957 = vmatpush1.msra.mxu0 0.0
        %1958 = vmatprep.subr.mxu0 0.0
        %1959 = vmatpush1.msra.mxu0 0.0
        %1960 = vmatprep.subr.mxu0 0.0
        %1961 = vmatpush1.msra.mxu0 0.0
        %1962 = vmatprep.subr.mxu0 0.0
        %1963 = vmatpush1.msra.mxu0 0.0
        %1964 = vmatprep.subr.mxu0 0.0
        %1965 = vmatpush1.msra.mxu0 0.0
        %1966 = vmatprep.subr.mxu0 0.0
        %1967 = vmatpush1.msra.mxu0 0.0
        %1968 = vmatprep.subr.mxu0 0.0
        %1969 = vmatpush1.msra.mxu0 0.0
        %1970 = vmatprep.subr.mxu0 0.0
        %1971 = vmatpush1.msra.mxu0 0.0
        %1972 = vmatprep.mubr.f32.mxu0 0.0
        %1973 = vmatmul.mubr.f32.gmra.mrb[0].mxu0 %v1897
        %v1974 = vpop.f32.mrb[0].mxu0
        %v1975 = vadd.f32 %v1879, %v1974
        %v1976 = vpop.f32.mrb[0].mxu0
        %v1977 = vadd.f32 %v1879, %v1976
        %1978 = vmatprep.mubr.f32.mxu0 0.0
        %1979 = vmatmul.mubr.f32.gmra.mrb[0].mxu0 %v1900
        %v1980 = vpop.f32.mrb[0].mxu0
        %v1981 = vadd.f32 %v1884, %v1980
        %v1982 = vpop.f32.mrb[0].mxu0
        %v1983 = vadd.f32 %v1884, %v1982
        %1984 = vmatprep.mubr.f32.mxu0 0.0
        %1985 = vmatmul.mubr.f32.gmra.mrb[0].mxu0 %v1903
        %v1986 = vpop.f32.mrb[0].mxu0
        %v1987 = vadd.f32 %v1889, %v1986
        %v1988 = vpop.f32.mrb[0].mxu0
        %v1989 = vadd.f32 %v1889, %v1988
        %1990 = vmatprep.mubr.f32.mxu0 0.0
        %1991 = vmatmul.mubr.f32.gmra.mrb[0].mxu0 %v1906
        %v1992 = vpop.f32.mrb[0].mxu0
        %v1993 = vadd.f32 %v1894, %v1992
        %v1994 = vpop.f32.mrb[0].mxu0
        %v1995 = vadd.f32 %v1894, %v1994
        %1996 = vdwg.mxu0
        %v1997 = vadd.f32 %v470, %v1975
        %v1998 = vadd.f32 %v471, %v1977
        %v1999 = vadd.f32 %v472, %v1981
        %v2000 = vadd.f32 %v473, %v1983
        %v2001 = vadd.f32 %v474, %v1987
        %v2002 = vadd.f32 %v475, %v1989
        %v2003 = vadd.f32 %v476, %v1993
        %v2004 = vadd.f32 %v477, %v1995
        %2005 = vst [vmem:[%s425] sm:$0xff] %v1997
        %2006 = vst [vmem:[%s425 + $0x8] sm:$0xff] %v1998
        %2007 = vst [vmem:[%s425 + $0x10] sm:$0xff] %v1999
        %2008 = vst [vmem:[%s425 + $0x18] sm:$0xff] %v2000
        %2009 = vst [vmem:[%s425 + $0x20] sm:$0xff] %v2001
        %2010 = vst [vmem:[%s425 + $0x28] sm:$0xff] %v2002
        %2011 = vst [vmem:[%s425 + $0x30] sm:$0xff] %v2003
        %2012 = vst [vmem:[%s425 + $0x38] sm:$0xff] %v2004
        %s2013 = sand.u32 %s210, 1
        %s2014 = scalar_lea.sflag [#allocation4], %s2013
        %s2015 = sand.u32 %s210, 1
        %s2016 = smul.addr %s2015, 64
        %s2017 = scalar_lea.vmem [#allocation16], %s2016
        // Predicated region
        $region85: #{_lambda_.1} parent=51 // pred_check
          %p2018 = pneg %p220
        $region86: #{_lambda_.1} parent=51 // pred_check_branch
          %2020 = sbr.rel (%p2018) target = $region88
        $region87: #{_lambda_.1} parent=51 // pred_region
          %s2022 = ssub.s32 1024, 1024
          %2023 = vsyncadd %s2014, %s2022
          %s2024 = smul.addr %s29, 8
          %s2025 = smul.addr %s2024, 128
          %s2026 = scalar_lea.hbm %s8, %s2025
          %s2027 = sshll.u32 %s2017, 4
          %s2028 = int_to_ptr.vmem [resolvable:$true] %s2027
          %2033 = dma.vmem_to_hbm [thread:$0]  %s2028, 1024, %s2026, %s2014, 256, 256, 16
        $region88: #{_lambda_.1} parent=51 // pred_fallthru
          _
      $region52: #{_lambda_.1} parent=5 // pred_fallthru
        _
      %p2034 = scmp.le.s32.totalorder 2, %s24
      // Predicated region
      $region89: #{_lambda_.1} parent=5 // pred_check
        %p2035 = pneg %p2034
      $region90: #{_lambda_.1} parent=5 // pred_check_branch
        %2037 = sbr.rel (%p2035) target = $region92
      $region91: #{_lambda_.1} parent=5 // pred_region
        %s2038 = ssub.s32 %s24, 2
        // Predicated region
        $region93: #{_lambda_.1} parent=91 // pred_check
          %p2039 = pneg %p226
        $region94: #{_lambda_.1} parent=91 // pred_check_branch
          %2041 = sbr.rel (%p2039) target = $region96
        $region95: #{_lambda_.1} parent=91 // pred_region
          %s2042 = sand.u32 %s211, 1
          %s2043 = scalar_lea.sflag [#allocation4], %s2042
          %s2044 = sand.u32 %s211, 1
          %s2045 = smul.addr %s2044, 64
          %s2046 = scalar_lea.vmem [#allocation16], %s2045
          %2047 = dma.done %s2043, 1024
        $region96: #{_lambda_.1} parent=91 // pred_fallthru
          _
      $region92: #{_lambda_.1} parent=5 // pred_fallthru
        _
    $region6: #{_lambda_.1} parent=1 // loop_footer
      %s28 = sadd.s32 1, %s24
    $region7: #{_lambda_.1} parent=1 // loop_footer_branch
      %23 = sbr.rel target = $region3
    $region8: #{_lambda_.1} parent=1 // loop_exit
      _
    %2048 = vsyncpa [#allocation3], 1
    %s2049 = scalar_lea.sflag [#allocation3], 1
    %2050 = vsyncpa %s2049, 1
    %2051 = vsyncpa [#allocation6], 1
    %2052 = vsyncpa [#allocation9], 1
    %2053 = vsyncpa [#allocation12], 1
    %2054 = vsyncpa [#allocation15], 1
    %2055 = vsyncpa [#allocation4], 1
    %s2056 = scalar_lea.sflag [#allocation4], 1
    %2057 = vsyncpa %s2056, 1

</llo_original>
